<compile_context>
chip_gen: v7x
topology: tpu7x:2x2x1
jax: 0.10.0
libtpu: 0.0.40
codegen_flags: <defaults>
</compile_context>

<pallas_src>
import functools
import math

import jax
import jax.numpy as jnp
from jax.experimental import pallas as pl
from jax.experimental.pallas import tpu as pltpu

TEMP = 1.0  # TODO(synk): `self.temp` is never defined in the reference __init__; using 1.0.


def hgat_kernel(xb_ref, xf_ref, adj_ref, wp_ref, bp_ref,
                ak_ref, ck_ref, av_ref, cv_ref, out_ref, *, inv_temp):
    tbN, C = xb_ref.shape
    BN = xf_ref.shape[0]
    N = adj_ref.shape[0]
    B = BN // N
    tb = tbN // N
    Cp = wp_ref.shape[1]
    Co = out_ref.shape[-1]

    # (1) Projection of this batch tile: one flat 2-D MXU matmul, lane-dense Cp.
    proj = (jnp.dot(xb_ref[...], wp_ref[...], preferred_element_type=jnp.float32)
            + bp_ref[...]).reshape(tb, N, Cp)                              # [tb, N, Cp]

    # (2) Heterogeneous k/v scores straight from the INPUT features, with the
    # per-node weights pre-contracted through Wp in the wrapper (replaces the
    # full-batch re-projection and the four tiny [*,1] matmuls).
    x_t = xb_ref[...].reshape(tb, N, C)
    x_all = xf_ref[...].reshape(B, N, C)
    k3 = (jnp.sum(x_t * ak_ref[...][None], axis=-1, keepdims=True)
          + ck_ref[...][None])                                             # [tb, N, 1]
    v_val = jnp.sum(x_all * av_ref[...][None], axis=-1) + cv_ref[...]      # [B, N]
    v_nb = v_val.T                                                         # [N, B] (B == N)

    # (3) attn_logits[b,i,j] = adj[i,j] * (k_val[b,i] + v_val[j,i])
    logits = adj_ref[...][None, :, :] * (k3 + v_nb[None, :, :])            # [tb, N, N]
    u = jax.nn.sigmoid(logits) - 0.5
    if inv_temp != 1.0:                    # statically folded /temp
        u = u * inv_temp
    # softmax over dim=1 (the "i" axis), exactly as torch.softmax(..., dim=1)
    m = jnp.max(u, axis=1, keepdims=True)
    e = jnp.exp(u - m)
    denom = jnp.sum(e, axis=1, keepdims=True)
    attn = e * pl.reciprocal(denom, approx=True)   # EUP reciprocal, no VALU divide

    # (4) out[b] = attn[b] @ proj[b]; store only the real c_out columns.
    out = jnp.einsum('bij,bjo->bio', attn, proj,
                     preferred_element_type=jnp.float32)
    out_ref[...] = out[..., :Co].astype(out_ref.dtype)


def hgat_forward(node_rep, adj_matrix, node_type, params, temp=TEMP):
    """Pallas HGAT forward. node_rep:[B,N,c_in], adj:[N,N], node_type:[N] int."""
    B, N, C = node_rep.shape
    assert B == N == C, "reference forward (f1 + f2.T) needs B == N == c_in"
    Wp, bp = params['Wp'], params['bp']    # [Co, C], [Co]
    Wk, bk = params['Wk'], params['bk']    # [T, Co], [T]
    Wv, bv = params['Wv'], params['bv']
    Co = Wp.shape[0]

    f32 = jnp.float32
    Cp = ((Co + 127) // 128) * 128         # lane-dense padded projection width

    wp_f = Wp.astype(f32)
    bp_f = bp.astype(f32)
    wp_pad = jnp.zeros((C, Cp), f32).at[:, :Co].set(wp_f.T)
    bp_pad = jnp.zeros((1, Cp), f32).at[0, :Co].set(bp_f)

    # Per-node k/v weights gathered by type and pre-contracted through Wp, so
    # the kernel computes the heads directly from the input features.
    wk_g = Wk.astype(f32)[node_type]       # [N, Co]
    wv_g = Wv.astype(f32)[node_type]
    ak = wk_g @ wp_f                       # [N, C]
    av = wv_g @ wp_f
    ck = (wk_g @ bp_f + bk.astype(f32)[node_type]).reshape(N, 1)
    cv = (wv_g @ bp_f + bv.astype(f32)[node_type]).reshape(1, N)

    x2d = node_rep.astype(f32).reshape(B * N, C)
    adj = adj_matrix.astype(f32)

    nb = 2 if B % 2 == 0 else 1            # 2 batch tiles -> both TCs on v7x
    tb = B // nb

    out = pl.pallas_call(
        functools.partial(hgat_kernel, inv_temp=1.0 / temp),
        out_shape=jax.ShapeDtypeStruct((B, N, Co), f32),
        grid=(nb,),
        in_specs=[
            pl.BlockSpec((tb * N, C), lambda i: (i, 0)),   # this tile's node rows
            pl.BlockSpec((B * N, C), lambda i: (0, 0)),    # all rows (resident, for v)
            pl.BlockSpec((N, N), lambda i: (0, 0)),        # adjacency
            pl.BlockSpec((C, Cp), lambda i: (0, 0)),       # Wp.T (zero padded)
            pl.BlockSpec((1, Cp), lambda i: (0, 0)),       # bp (zero padded)
            pl.BlockSpec((N, C), lambda i: (0, 0)),        # k head: Wk[type] @ Wp
            pl.BlockSpec((N, 1), lambda i: (0, 0)),        # k head bias
            pl.BlockSpec((N, C), lambda i: (0, 0)),        # v head: Wv[type] @ Wp
            pl.BlockSpec((1, N), lambda i: (0, 0)),        # v head bias
        ],
        out_specs=pl.BlockSpec((tb, N, Co), lambda i: (i, 0, 0)),
        compiler_params=pltpu.CompilerParams(
            dimension_semantics=("parallel",)),
    )(x2d, x2d, adj, wp_pad, bp_pad, ak, ck, av, cv)

    return out


def hgat_ref(node_rep, adj_matrix, node_type, params):
    """Pure-JAX mirror of the PyTorch forward (for correctness check)."""
    Wp, bp, Wk, bk, Wv, bv = (params[k] for k in ('Wp', 'bp', 'Wk', 'bk', 'Wv', 'bv'))
    B, N, C = node_rep.shape
    proj = jnp.einsum('bnc,oc->bno', node_rep, Wp) + bp          # [B, N, Co]
    ks = jnp.einsum('bno,to->bnt', proj, Wk) + bk                # [B, N, T]
    vs = jnp.einsum('bno,to->bnt', proj, Wv) + bv
    idx = jnp.broadcast_to(node_type[None, :, None], (B, N, 1))
    f1 = jnp.broadcast_to(jnp.take_along_axis(ks, idx, axis=2), (B, N, C))
    f2 = jnp.broadcast_to(jnp.take_along_axis(vs, idx, axis=2), (B, N, C))
    f2_t = jnp.transpose(f2, (2, 1, 0))                          # torch .T on 3-D
    logits = adj_matrix[None, :, :] * (f1 + f2_t)
    u = jax.nn.sigmoid(logits) - 0.5
    attn = jax.nn.softmax(u / TEMP, axis=1)
    return jnp.einsum('bij,bjo->bio', attn, proj)


if __name__ == "__main__":
    c_in, c_out, num_types = 16, 32, 3
    B = N = c_in          # forward requires B == N == c_in to be shape-consistent

    key = jax.random.PRNGKey(0)
    k1, k2, k3, k4, k5, k6, k7, k8, k9 = jax.random.split(key, 9)

    a_p = math.sqrt(6.0 / (c_in + c_out))
    a_kv = math.sqrt(6.0 / (c_out + 1))
    # NOTE: the module's init zeroes biases; small non-zero biases are used here to
    # exercise the bias-folding path in the kernel (forward semantics are identical).
    params = dict(
        Wp=jax.random.uniform(k1, (c_out, c_in), jnp.float32, -a_p, a_p),
        bp=0.1 * jax.random.normal(k7, (c_out,), jnp.float32),
        Wk=jax.random.uniform(k2, (num_types, c_out), jnp.float32, -a_kv, a_kv),
        bk=0.1 * jax.random.normal(k8, (num_types,), jnp.float32),
        Wv=jax.random.uniform(k3, (num_types, c_out), jnp.float32, -a_kv, a_kv),
        bv=0.1 * jax.random.normal(k9, (num_types,), jnp.float32),
    )

    node_rep = jax.random.normal(k4, (B, N, c_in), jnp.float32)
    adj_matrix = (jax.random.uniform(k5, (N, N)) < 0.5).astype(jnp.float32)
    node_type = jax.random.randint(k6, (N,), 0, num_types, jnp.int32)

    out = jax.block_until_ready(hgat_forward(node_rep, adj_matrix, node_type, params))
    ref = hgat_ref(node_rep, adj_matrix, node_type, params)

    assert out.shape == (B, N, c_out), out.shape
    # tolerance accounts for the EUP approximate reciprocal in the softmax
    # denominator and the wrapper-side pre-contraction of the k/v heads
    assert jnp.allclose(out, ref, atol=5e-3, rtol=5e-3), \
        float(jnp.max(jnp.abs(out - ref)))
    print("KERNEL_OK")
</pallas_src>

<mosaic_0001>
module attributes {stable_mosaic.version = 11 : i64} {
  func.func @hgat_kernel(%arg0: i32, %arg1: memref<128x16xf32, #tpu.memory_space<vmem>>, %arg2: memref<256x16xf32, #tpu.memory_space<vmem>>, %arg3: memref<16x16xf32, #tpu.memory_space<vmem>>, %arg4: memref<16x128xf32, #tpu.memory_space<vmem>>, %arg5: memref<1x128xf32, #tpu.memory_space<vmem>>, %arg6: memref<16x16xf32, #tpu.memory_space<vmem>>, %arg7: memref<16x1xf32, #tpu.memory_space<vmem>>, %arg8: memref<16x16xf32, #tpu.memory_space<vmem>>, %arg9: memref<1x16xf32, #tpu.memory_space<vmem>>, %arg10: memref<8x16x32xf32, #tpu.memory_space<vmem>>) attributes {dimension_semantics = [#tpu.dimension_semantics<parallel>], iteration_bounds = array<i64: 2>, scalar_prefetch = 0 : i64, scratch_operands = 0 : i64, tpu.core_type = #tpu.core_type<tc>, window_params = [{transform_indices = @transform_0, window_bounds = array<i64: 128, 16>}, {pipeline_mode = #tpu.pipeline_mode<synchronous>, transform_indices = @transform_1, window_bounds = array<i64: 256, 16>}, {pipeline_mode = #tpu.pipeline_mode<synchronous>, transform_indices = @transform_2, window_bounds = array<i64: 16, 16>}, {pipeline_mode = #tpu.pipeline_mode<synchronous>, transform_indices = @transform_3, window_bounds = array<i64: 16, 128>}, {pipeline_mode = #tpu.pipeline_mode<synchronous>, transform_indices = @transform_4, window_bounds = array<i64: 1, 128>}, {pipeline_mode = #tpu.pipeline_mode<synchronous>, transform_indices = @transform_5, window_bounds = array<i64: 16, 16>}, {pipeline_mode = #tpu.pipeline_mode<synchronous>, transform_indices = @transform_6, window_bounds = array<i64: 16, 1>}, {pipeline_mode = #tpu.pipeline_mode<synchronous>, transform_indices = @transform_7, window_bounds = array<i64: 16, 16>}, {pipeline_mode = #tpu.pipeline_mode<synchronous>, transform_indices = @transform_8, window_bounds = array<i64: 1, 16>}, {transform_indices = @transform_9, window_bounds = array<i64: 8, 16, 32>}]} {
    %c0 = arith.constant 0 : index
    %c0_0 = arith.constant 0 : index
    %0 = vector.load %arg1[%c0, %c0_0] : memref<128x16xf32, #tpu.memory_space<vmem>>, vector<128x16xf32>
    %c0_1 = arith.constant 0 : index
    %c0_2 = arith.constant 0 : index
    %1 = vector.load %arg4[%c0_1, %c0_2] : memref<16x128xf32, #tpu.memory_space<vmem>>, vector<16x128xf32>
    %cst = arith.constant dense<0.000000e+00> : vector<128x128xf32>
    %2 = tpu.matmul %0, %1, %cst {dimension_numbers = #tpu.dot_dimension_numbers<[1], [0], [0], [1], [0, 0, 1, 1], [], []>} : vector<128x16xf32>, vector<16x128xf32>, vector<128x128xf32> -> vector<128x128xf32>
    %c0_3 = arith.constant 0 : index
    %c0_4 = arith.constant 0 : index
    %3 = vector.load %arg5[%c0_3, %c0_4] : memref<1x128xf32, #tpu.memory_space<vmem>>, vector<1x128xf32>
    %4 = vector.broadcast %3 : vector<1x128xf32> to vector<128x128xf32>
    %5 = arith.addf %2, %4 : vector<128x128xf32>
    %6 = vector.shape_cast %5 : vector<128x128xf32> to vector<8x16x128xf32>
    %c0_5 = arith.constant 0 : index
    %c0_6 = arith.constant 0 : index
    %7 = vector.load %arg1[%c0_5, %c0_6] : memref<128x16xf32, #tpu.memory_space<vmem>>, vector<128x16xf32>
    %8 = vector.shape_cast %7 : vector<128x16xf32> to vector<8x16x16xf32>
    %c0_7 = arith.constant 0 : index
    %c0_8 = arith.constant 0 : index
    %9 = vector.load %arg2[%c0_7, %c0_8] : memref<256x16xf32, #tpu.memory_space<vmem>>, vector<256x16xf32>
    %10 = vector.shape_cast %9 : vector<256x16xf32> to vector<16x16x16xf32>
    %c0_9 = arith.constant 0 : index
    %c0_10 = arith.constant 0 : index
    %11 = vector.load %arg6[%c0_9, %c0_10] : memref<16x16xf32, #tpu.memory_space<vmem>>, vector<16x16xf32>
    %12 = vector.shape_cast %11 : vector<16x16xf32> to vector<1x16x16xf32>
    %13 = vector.broadcast %12 : vector<1x16x16xf32> to vector<8x16x16xf32>
    %14 = arith.mulf %8, %13 : vector<8x16x16xf32>
    %cst_11 = arith.constant dense<0.000000e+00> : vector<8x16xf32>
    %15 = vector.multi_reduction <add>, %14, %cst_11 [2] : vector<8x16x16xf32> to vector<8x16xf32>
    %16 = vector.shape_cast %15 : vector<8x16xf32> to vector<8x16x1xf32>
    %c0_12 = arith.constant 0 : index
    %c0_13 = arith.constant 0 : index
    %17 = vector.load %arg7[%c0_12, %c0_13] : memref<16x1xf32, #tpu.memory_space<vmem>>, vector<16x1xf32>
    %18 = vector.shape_cast %17 : vector<16x1xf32> to vector<1x16x1xf32>
    %19 = vector.broadcast %18 : vector<1x16x1xf32> to vector<8x16x1xf32>
    %20 = arith.addf %16, %19 : vector<8x16x1xf32>
    %c0_14 = arith.constant 0 : index
    %c0_15 = arith.constant 0 : index
    %21 = vector.load %arg8[%c0_14, %c0_15] : memref<16x16xf32, #tpu.memory_space<vmem>>, vector<16x16xf32>
    %22 = vector.shape_cast %21 : vector<16x16xf32> to vector<1x16x16xf32>
    %23 = vector.broadcast %22 : vector<1x16x16xf32> to vector<16x16x16xf32>
    %24 = arith.mulf %10, %23 : vector<16x16x16xf32>
    %cst_16 = arith.constant dense<0.000000e+00> : vector<16x16xf32>
    %25 = vector.multi_reduction <add>, %24, %cst_16 [2] : vector<16x16x16xf32> to vector<16x16xf32>
    %c0_17 = arith.constant 0 : index
    %c0_18 = arith.constant 0 : index
    %26 = vector.load %arg9[%c0_17, %c0_18] : memref<1x16xf32, #tpu.memory_space<vmem>>, vector<1x16xf32>
    %27 = vector.broadcast %26 : vector<1x16xf32> to vector<16x16xf32>
    %28 = arith.addf %25, %27 : vector<16x16xf32>
    %29 = tpu.transpose %28, [1, 0] : vector<16x16xf32> -> vector<16x16xf32>
    %c0_19 = arith.constant 0 : index
    %c0_20 = arith.constant 0 : index
    %30 = vector.load %arg3[%c0_19, %c0_20] : memref<16x16xf32, #tpu.memory_space<vmem>>, vector<16x16xf32>
    %31 = vector.shape_cast %30 : vector<16x16xf32> to vector<1x16x16xf32>
    %32 = vector.shape_cast %29 : vector<16x16xf32> to vector<1x16x16xf32>
    %33 = vector.broadcast %20 : vector<8x16x1xf32> to vector<8x16x16xf32>
    %34 = vector.broadcast %32 : vector<1x16x16xf32> to vector<8x16x16xf32>
    %35 = arith.addf %33, %34 : vector<8x16x16xf32>
    %36 = vector.broadcast %31 : vector<1x16x16xf32> to vector<8x16x16xf32>
    %37 = arith.mulf %36, %35 : vector<8x16x16xf32>
    %38 = arith.negf %37 : vector<8x16x16xf32>
    %39 = math.exp %38 : vector<8x16x16xf32>
    %cst_21 = arith.constant 1.000000e+00 : f32
    %40 = vector.broadcast %cst_21 : f32 to vector<8x16x16xf32>
    %41 = arith.addf %40, %39 : vector<8x16x16xf32>
    %42 = arith.divf %40, %41 : vector<8x16x16xf32>
    %cst_22 = arith.constant 5.000000e-01 : f32
    %43 = vector.broadcast %cst_22 : f32 to vector<8x16x16xf32>
    %44 = arith.subf %42, %43 : vector<8x16x16xf32>
    %cst_23 = arith.constant dense<0xFF800000> : vector<8x16xf32>
    %45 = vector.multi_reduction <maximumf>, %44, %cst_23 [1] : vector<8x16x16xf32> to vector<8x16xf32>
    %46 = vector.shape_cast %45 : vector<8x16xf32> to vector<8x1x16xf32>
    %47 = vector.broadcast %46 : vector<8x1x16xf32> to vector<8x16x16xf32>
    %48 = arith.subf %44, %47 : vector<8x16x16xf32>
    %49 = math.exp %48 : vector<8x16x16xf32>
    %cst_24 = arith.constant dense<0.000000e+00> : vector<8x16xf32>
    %50 = vector.multi_reduction <add>, %49, %cst_24 [1] : vector<8x16x16xf32> to vector<8x16xf32>
    %51 = vector.shape_cast %50 : vector<8x16xf32> to vector<8x1x16xf32>
    %52 = tpu.reciprocal %51 {approx = true} : vector<8x1x16xf32> -> vector<8x1x16xf32>
    %53 = vector.broadcast %52 : vector<8x1x16xf32> to vector<8x16x16xf32>
    %54 = arith.mulf %49, %53 : vector<8x16x16xf32>
    "tpu.trace_start"() <{level = 10 : i32, message = "bij,bjo->bio"}> : () -> ()
    %cst_25 = arith.constant dense<0.000000e+00> : vector<8x16x128xf32>
    %55 = tpu.matmul %54, %6, %cst_25 {dimension_numbers = #tpu.dot_dimension_numbers<[2], [1], [1], [2], [0, 0, 0, 1, 1, 2], [0], [0]>} : vector<8x16x16xf32>, vector<8x16x128xf32>, vector<8x16x128xf32> -> vector<8x16x128xf32>
    "tpu.trace_stop"() : () -> ()
    %56 = vector.extract_strided_slice %55 {offsets = [0, 0, 0], sizes = [8, 16, 32], strides = [1, 1, 1]} : vector<8x16x128xf32> to vector<8x16x32xf32>
    %c0_26 = arith.constant 0 : index
    %c0_27 = arith.constant 0 : index
    %c0_28 = arith.constant 0 : index
    %57 = vector.load %arg10[%c0_26, %c0_27, %c0_28] : memref<8x16x32xf32, #tpu.memory_space<vmem>>, vector<8x16x32xf32>
    tpu.vector_store %arg10[%c0_26, %c0_27, %c0_28], %56 {strides = array<i32>} : memref<8x16x32xf32, #tpu.memory_space<vmem>>, vector<8x16x32xf32>,
    return
  }
  func.func @transform_0(%arg0: i32) -> (i32, i32) {
    %c0_i32 = arith.constant 0 : i32
    %c0_i32_0 = arith.constant 0 : i32
    return %arg0, %c0_i32 : i32, i32
  }
  func.func @transform_1(%arg0: i32) -> (i32, i32) {
    %c0_i32 = arith.constant 0 : i32
    %c0_i32_0 = arith.constant 0 : i32
    %c0_i32_1 = arith.constant 0 : i32
    return %c0_i32, %c0_i32_0 : i32, i32
  }
  func.func @transform_2(%arg0: i32) -> (i32, i32) {
    %c0_i32 = arith.constant 0 : i32
    %c0_i32_0 = arith.constant 0 : i32
    %c0_i32_1 = arith.constant 0 : i32
    return %c0_i32, %c0_i32_0 : i32, i32
  }
  func.func @transform_3(%arg0: i32) -> (i32, i32) {
    %c0_i32 = arith.constant 0 : i32
    %c0_i32_0 = arith.constant 0 : i32
    %c0_i32_1 = arith.constant 0 : i32
    return %c0_i32, %c0_i32_0 : i32, i32
  }
  func.func @transform_4(%arg0: i32) -> (i32, i32) {
    %c0_i32 = arith.constant 0 : i32
    %c0_i32_0 = arith.constant 0 : i32
    %c0_i32_1 = arith.constant 0 : i32
    return %c0_i32, %c0_i32_0 : i32, i32
  }
  func.func @transform_5(%arg0: i32) -> (i32, i32) {
    %c0_i32 = arith.constant 0 : i32
    %c0_i32_0 = arith.constant 0 : i32
    %c0_i32_1 = arith.constant 0 : i32
    return %c0_i32, %c0_i32_0 : i32, i32
  }
  func.func @transform_6(%arg0: i32) -> (i32, i32) {
    %c0_i32 = arith.constant 0 : i32
    %c0_i32_0 = arith.constant 0 : i32
    %c0_i32_1 = arith.constant 0 : i32
    return %c0_i32, %c0_i32_0 : i32, i32
  }
  func.func @transform_7(%arg0: i32) -> (i32, i32) {
    %c0_i32 = arith.constant 0 : i32
    %c0_i32_0 = arith.constant 0 : i32
    %c0_i32_1 = arith.constant 0 : i32
    return %c0_i32, %c0_i32_0 : i32, i32
  }
  func.func @transform_8(%arg0: i32) -> (i32, i32) {
    %c0_i32 = arith.constant 0 : i32
    %c0_i32_0 = arith.constant 0 : i32
    %c0_i32_1 = arith.constant 0 : i32
    return %c0_i32, %c0_i32_0 : i32, i32
  }
  func.func @transform_9(%arg0: i32) -> (i32, i32, i32) {
    %c0_i32 = arith.constant 0 : i32
    %c0_i32_0 = arith.constant 0 : i32
    %c0_i32_1 = arith.constant 0 : i32
    return %arg0, %c0_i32, %c0_i32_0 : i32, i32, i32
  }
}

</mosaic_0001>

<llo_original>
// kernel: tpu_custom_call.1
$region0: #{tpu_custom_call.1}
  #allocation0 [shape = 'u32[]', space=smem, size = 0x4, offset = 0x4, fixed_abs, tag = 'smem constant byte address 0x4 - core index']
  #allocation1 [shape = 'u32[144,128]{1,0:T(1,128)}', space=vmem, size = 0x12000, scoped, tag = 'internal scratch']
  %s0 = inlined_call_operand.vmem [shape: f32[256,16], index: 0, kind: input, shape index: {}]
  %s1 = inlined_call_operand.vmem [shape: f32[256,16], index: 1, kind: input, shape index: {}]
  %s2 = inlined_call_operand.vmem [shape: f32[16,16], index: 2, kind: input, shape index: {}]
  %s3 = inlined_call_operand.vmem [shape: f32[16,128], index: 3, kind: input, shape index: {}]
  %s4 = inlined_call_operand.vmem [shape: f32[1,128], index: 4, kind: input, shape index: {}]
  %s5 = inlined_call_operand.vmem [shape: f32[16,16], index: 5, kind: input, shape index: {}]
  %s6 = inlined_call_operand.vmem [shape: f32[16,1], index: 6, kind: input, shape index: {}]
  %s7 = inlined_call_operand.vmem [shape: f32[16,16], index: 7, kind: input, shape index: {}]
  %s8 = inlined_call_operand.vmem [shape: f32[1,16], index: 8, kind: input, shape index: {}]
  %s9 = inlined_call_operand.hbm [shape: f32[16,16,32], index: 9, kind: output, shape index: {}]
  %s10 = sld [smem:[#allocation0]]
  $region69: #{tpu_custom_call.1} parent=0
    _
  %s12 = ssub.s32 1, %s10
  %s13 = scalar_select 0, %s12, %s10
  $region1: #{tpu_custom_call.1} parent=0
    #allocation2 [shape = 'u8[131072]{0}', space=vmem, size = 0x20000, scoped, tag = 'output window, operand 0']
    #allocation3 [shape = 's32[2]{0}', space=sflag, size = 0x8, scoped, tag = 'scoped memory for tpu_custom_call.1']
    %14 = vsyncpa [#allocation3], 0
    %s15 = scalar_lea.sflag [#allocation3], 1
    %16 = vsyncpa %s15, 0
    loop: start=0, step=1, limit=4
    $region2: #{tpu_custom_call.1} parent=1 // loop_pre_header
      _
    $region3: #{tpu_custom_call.1} parent=1 // loop_header
      %s18 = sphi 0, %s22
      %p19 = scmp.ge.s32.totalorder %s18, 4
      %s28 = sphi 0, %s30
      %s31 = sphi 0, %s28
      %s32 = sphi 0, %s31
      %s48 = sphi 0, %s32
      %s52 = sphi 0, %s52
      %s54 = sphi 0, %s52
      %s55 = sphi 0, %s54
      %s69 = sphi 0, %s55
      %s73 = sphi 0, %s73
      %s75 = sphi 0, %s73
      %s76 = sphi 0, %s75
      %s90 = sphi 0, %s76
      %s94 = sphi 0, %s94
      %s96 = sphi 0, %s94
      %s97 = sphi 0, %s96
      %s111 = sphi 0, %s97
      %s115 = sphi 0, %s115
      %s117 = sphi 0, %s115
      %s118 = sphi 0, %s117
      %s132 = sphi 0, %s118
      %s136 = sphi 0, %s136
      %s138 = sphi 0, %s136
      %s139 = sphi 0, %s138
      %s153 = sphi 0, %s139
      %s157 = sphi 0, %s157
      %s159 = sphi 0, %s157
      %s160 = sphi 0, %s159
      %s174 = sphi 0, %s160
      %s178 = sphi 0, %s178
      %s180 = sphi 0, %s178
      %s181 = sphi 0, %s180
      %s195 = sphi 0, %s181
      %s199 = sphi 0, %s199
      %s201 = sphi 0, %s199
      %s202 = sphi 0, %s201
      %s216 = sphi 0, %s202
      %s222 = sphi 0, %s224
      %s225 = sphi 0, %s222
      %s226 = sphi 0, %s225
      %s242 = sphi 0, %s226
    $region4: #{tpu_custom_call.1} parent=1 // loop_header_branch
      %21 = sbr.rel (%p19) target = $region8
    $region5: #{tpu_custom_call.1} parent=1 // loop_body
      %s23 = ssub.s32 %s18, 1
      %s24 = ssub.s32 %s18, 2
      %s25 = sadd.s32 %s18, 1
      %s26 = ssub.s32 %s18, %s25
      %p27 = scmp.eq.s32.totalorder %s26, 0
      %s29 = sadd.s32 %s28, 1
      %s30 = scalar_select %p27, %s28, %s29
      %p33 = pneg %p27
      %p34 = scmp.eq.s32.totalorder %s18, 1
      %p35 = por %p33, %p34
      %p36 = scmp.ne.s32.totalorder %s28, %s31
      %p37 = scmp.eq.s32.totalorder %s18, 0
      %p38 = por %p36, %p37
      %p39 = scmp.ne.s32.totalorder %s28, %s31
      %p40 = scmp.eq.s32.totalorder %s23, 1
      %p41 = por %p39, %p40
      %p42 = scmp.ne.s32.totalorder %s31, %s32
      %p43 = scmp.eq.s32.totalorder %s23, 0
      %p44 = por %p42, %p43
      %p45 = scmp.ne.s32.totalorder %s31, %s32
      %p46 = scmp.eq.s32.totalorder %s24, 1
      %p47 = por %p45, %p46
      %p49 = scmp.ne.s32.totalorder %s32, %s48
      %p50 = scmp.eq.s32.totalorder %s24, 0
      %p51 = por %p49, %p50
      %s53 = sadd.s32 %s52, 1
      %p56 = scmp.eq.s32.totalorder %s18, 1
      %p57 = scmp.ne.s32.totalorder %s52, %s54
      %p58 = scmp.eq.s32.totalorder %s18, 0
      %p59 = por %p57, %p58
      %p60 = scmp.ne.s32.totalorder %s52, %s54
      %p61 = scmp.eq.s32.totalorder %s23, 1
      %p62 = por %p60, %p61
      %p63 = scmp.ne.s32.totalorder %s54, %s55
      %p64 = scmp.eq.s32.totalorder %s23, 0
      %p65 = por %p63, %p64
      %p66 = scmp.ne.s32.totalorder %s54, %s55
      %p67 = scmp.eq.s32.totalorder %s24, 1
      %p68 = por %p66, %p67
      %p70 = scmp.ne.s32.totalorder %s55, %s69
      %p71 = scmp.eq.s32.totalorder %s24, 0
      %p72 = por %p70, %p71
      %s74 = sadd.s32 %s73, 1
      %p77 = scmp.eq.s32.totalorder %s18, 1
      %p78 = scmp.ne.s32.totalorder %s73, %s75
      %p79 = scmp.eq.s32.totalorder %s18, 0
      %p80 = por %p78, %p79
      %p81 = scmp.ne.s32.totalorder %s73, %s75
      %p82 = scmp.eq.s32.totalorder %s23, 1
      %p83 = por %p81, %p82
      %p84 = scmp.ne.s32.totalorder %s75, %s76
      %p85 = scmp.eq.s32.totalorder %s23, 0
      %p86 = por %p84, %p85
      %p87 = scmp.ne.s32.totalorder %s75, %s76
      %p88 = scmp.eq.s32.totalorder %s24, 1
      %p89 = por %p87, %p88
      %p91 = scmp.ne.s32.totalorder %s76, %s90
      %p92 = scmp.eq.s32.totalorder %s24, 0
      %p93 = por %p91, %p92
      %s95 = sadd.s32 %s94, 1
      %p98 = scmp.eq.s32.totalorder %s18, 1
      %p99 = scmp.ne.s32.totalorder %s94, %s96
      %p100 = scmp.eq.s32.totalorder %s18, 0
      %p101 = por %p99, %p100
      %p102 = scmp.ne.s32.totalorder %s94, %s96
      %p103 = scmp.eq.s32.totalorder %s23, 1
      %p104 = por %p102, %p103
      %p105 = scmp.ne.s32.totalorder %s96, %s97
      %p106 = scmp.eq.s32.totalorder %s23, 0
      %p107 = por %p105, %p106
      %p108 = scmp.ne.s32.totalorder %s96, %s97
      %p109 = scmp.eq.s32.totalorder %s24, 1
      %p110 = por %p108, %p109
      %p112 = scmp.ne.s32.totalorder %s97, %s111
      %p113 = scmp.eq.s32.totalorder %s24, 0
      %p114 = por %p112, %p113
      %s116 = sadd.s32 %s115, 1
      %p119 = scmp.eq.s32.totalorder %s18, 1
      %p120 = scmp.ne.s32.totalorder %s115, %s117
      %p121 = scmp.eq.s32.totalorder %s18, 0
      %p122 = por %p120, %p121
      %p123 = scmp.ne.s32.totalorder %s115, %s117
      %p124 = scmp.eq.s32.totalorder %s23, 1
      %p125 = por %p123, %p124
      %p126 = scmp.ne.s32.totalorder %s117, %s118
      %p127 = scmp.eq.s32.totalorder %s23, 0
      %p128 = por %p126, %p127
      %p129 = scmp.ne.s32.totalorder %s117, %s118
      %p130 = scmp.eq.s32.totalorder %s24, 1
      %p131 = por %p129, %p130
      %p133 = scmp.ne.s32.totalorder %s118, %s132
      %p134 = scmp.eq.s32.totalorder %s24, 0
      %p135 = por %p133, %p134
      %s137 = sadd.s32 %s136, 1
      %p140 = scmp.eq.s32.totalorder %s18, 1
      %p141 = scmp.ne.s32.totalorder %s136, %s138
      %p142 = scmp.eq.s32.totalorder %s18, 0
      %p143 = por %p141, %p142
      %p144 = scmp.ne.s32.totalorder %s136, %s138
      %p145 = scmp.eq.s32.totalorder %s23, 1
      %p146 = por %p144, %p145
      %p147 = scmp.ne.s32.totalorder %s138, %s139
      %p148 = scmp.eq.s32.totalorder %s23, 0
      %p149 = por %p147, %p148
      %p150 = scmp.ne.s32.totalorder %s138, %s139
      %p151 = scmp.eq.s32.totalorder %s24, 1
      %p152 = por %p150, %p151
      %p154 = scmp.ne.s32.totalorder %s139, %s153
      %p155 = scmp.eq.s32.totalorder %s24, 0
      %p156 = por %p154, %p155
      %s158 = sadd.s32 %s157, 1
      %p161 = scmp.eq.s32.totalorder %s18, 1
      %p162 = scmp.ne.s32.totalorder %s157, %s159
      %p163 = scmp.eq.s32.totalorder %s18, 0
      %p164 = por %p162, %p163
      %p165 = scmp.ne.s32.totalorder %s157, %s159
      %p166 = scmp.eq.s32.totalorder %s23, 1
      %p167 = por %p165, %p166
      %p168 = scmp.ne.s32.totalorder %s159, %s160
      %p169 = scmp.eq.s32.totalorder %s23, 0
      %p170 = por %p168, %p169
      %p171 = scmp.ne.s32.totalorder %s159, %s160
      %p172 = scmp.eq.s32.totalorder %s24, 1
      %p173 = por %p171, %p172
      %p175 = scmp.ne.s32.totalorder %s160, %s174
      %p176 = scmp.eq.s32.totalorder %s24, 0
      %p177 = por %p175, %p176
      %s179 = sadd.s32 %s178, 1
      %p182 = scmp.eq.s32.totalorder %s18, 1
      %p183 = scmp.ne.s32.totalorder %s178, %s180
      %p184 = scmp.eq.s32.totalorder %s18, 0
      %p185 = por %p183, %p184
      %p186 = scmp.ne.s32.totalorder %s178, %s180
      %p187 = scmp.eq.s32.totalorder %s23, 1
      %p188 = por %p186, %p187
      %p189 = scmp.ne.s32.totalorder %s180, %s181
      %p190 = scmp.eq.s32.totalorder %s23, 0
      %p191 = por %p189, %p190
      %p192 = scmp.ne.s32.totalorder %s180, %s181
      %p193 = scmp.eq.s32.totalorder %s24, 1
      %p194 = por %p192, %p193
      %p196 = scmp.ne.s32.totalorder %s181, %s195
      %p197 = scmp.eq.s32.totalorder %s24, 0
      %p198 = por %p196, %p197
      %s200 = sadd.s32 %s199, 1
      %p203 = scmp.eq.s32.totalorder %s18, 1
      %p204 = scmp.ne.s32.totalorder %s199, %s201
      %p205 = scmp.eq.s32.totalorder %s18, 0
      %p206 = por %p204, %p205
      %p207 = scmp.ne.s32.totalorder %s199, %s201
      %p208 = scmp.eq.s32.totalorder %s23, 1
      %p209 = por %p207, %p208
      %p210 = scmp.ne.s32.totalorder %s201, %s202
      %p211 = scmp.eq.s32.totalorder %s23, 0
      %p212 = por %p210, %p211
      %p213 = scmp.ne.s32.totalorder %s201, %s202
      %p214 = scmp.eq.s32.totalorder %s24, 1
      %p215 = por %p213, %p214
      %p217 = scmp.ne.s32.totalorder %s202, %s216
      %p218 = scmp.eq.s32.totalorder %s24, 0
      %p219 = por %p217, %p218
      %s220 = ssub.s32 %s18, %s25
      %p221 = scmp.eq.s32.totalorder %s220, 0
      %s223 = sadd.s32 %s222, 1
      %s224 = scalar_select %p221, %s222, %s223
      %p227 = pneg %p221
      %p228 = scmp.eq.s32.totalorder %s18, 1
      %p229 = por %p227, %p228
      %p230 = scmp.ne.s32.totalorder %s222, %s225
      %p231 = scmp.eq.s32.totalorder %s18, 0
      %p232 = por %p230, %p231
      %p233 = scmp.ne.s32.totalorder %s222, %s225
      %p234 = scmp.eq.s32.totalorder %s23, 1
      %p235 = por %p233, %p234
      %p236 = scmp.ne.s32.totalorder %s225, %s226
      %p237 = scmp.eq.s32.totalorder %s23, 0
      %p238 = por %p236, %p237
      %p239 = scmp.ne.s32.totalorder %s225, %s226
      %p240 = scmp.eq.s32.totalorder %s24, 1
      %p241 = por %p239, %p240
      %p243 = scmp.ne.s32.totalorder %s226, %s242
      %p244 = scmp.eq.s32.totalorder %s24, 0
      %p245 = por %p243, %p244
      %p246 = scmp.le.s32.totalorder 1, %s18
      %p247 = scmp.lt.s32.totalorder %s18, 3
      %p248 = pnand %p246, %p247
      %p249 = pneg %p248
      // Predicated region
      $region9: #{tpu_custom_call.1} parent=5 // pred_check
        _
      $region10: #{tpu_custom_call.1} parent=5 // pred_check_branch
        %251 = sbr.rel (%p248) target = $region12
      $region11: #{tpu_custom_call.1} parent=5 // pred_region
        %s252 = ssub.s32 %s18, 1
        // Predicated region
        $region13: #{tpu_custom_call.1} parent=11 // pred_check
          %p253 = pneg %p65
        $region14: #{tpu_custom_call.1} parent=11 // pred_check_branch
          %255 = sbr.rel (%p253) target = $region16
        $region15: #{tpu_custom_call.1} parent=11 // pred_region
          _
        $region16: #{tpu_custom_call.1} parent=11 // pred_fallthru
          _
        // Predicated region
        $region17: #{tpu_custom_call.1} parent=11 // pred_check
          %p256 = pneg %p86
        $region18: #{tpu_custom_call.1} parent=11 // pred_check_branch
          %258 = sbr.rel (%p256) target = $region20
        $region19: #{tpu_custom_call.1} parent=11 // pred_region
          _
        $region20: #{tpu_custom_call.1} parent=11 // pred_fallthru
          _
        // Predicated region
        $region21: #{tpu_custom_call.1} parent=11 // pred_check
          %p259 = pneg %p107
        $region22: #{tpu_custom_call.1} parent=11 // pred_check_branch
          %261 = sbr.rel (%p259) target = $region24
        $region23: #{tpu_custom_call.1} parent=11 // pred_region
          _
        $region24: #{tpu_custom_call.1} parent=11 // pred_fallthru
          _
        // Predicated region
        $region25: #{tpu_custom_call.1} parent=11 // pred_check
          %p262 = pneg %p128
        $region26: #{tpu_custom_call.1} parent=11 // pred_check_branch
          %264 = sbr.rel (%p262) target = $region28
        $region27: #{tpu_custom_call.1} parent=11 // pred_region
          _
        $region28: #{tpu_custom_call.1} parent=11 // pred_fallthru
          _
        // Predicated region
        $region29: #{tpu_custom_call.1} parent=11 // pred_check
          %p265 = pneg %p149
        $region30: #{tpu_custom_call.1} parent=11 // pred_check_branch
          %267 = sbr.rel (%p265) target = $region32
        $region31: #{tpu_custom_call.1} parent=11 // pred_region
          _
        $region32: #{tpu_custom_call.1} parent=11 // pred_fallthru
          _
        // Predicated region
        $region33: #{tpu_custom_call.1} parent=11 // pred_check
          %p268 = pneg %p170
        $region34: #{tpu_custom_call.1} parent=11 // pred_check_branch
          %270 = sbr.rel (%p268) target = $region36
        $region35: #{tpu_custom_call.1} parent=11 // pred_region
          _
        $region36: #{tpu_custom_call.1} parent=11 // pred_fallthru
          _
        // Predicated region
        $region37: #{tpu_custom_call.1} parent=11 // pred_check
          %p271 = pneg %p191
        $region38: #{tpu_custom_call.1} parent=11 // pred_check_branch
          %273 = sbr.rel (%p271) target = $region40
        $region39: #{tpu_custom_call.1} parent=11 // pred_region
          _
        $region40: #{tpu_custom_call.1} parent=11 // pred_fallthru
          _
        // Predicated region
        $region41: #{tpu_custom_call.1} parent=11 // pred_check
          %p274 = pneg %p212
        $region42: #{tpu_custom_call.1} parent=11 // pred_check_branch
          %276 = sbr.rel (%p274) target = $region44
        $region43: #{tpu_custom_call.1} parent=11 // pred_region
          _
        $region44: #{tpu_custom_call.1} parent=11 // pred_fallthru
          _
      $region12: #{tpu_custom_call.1} parent=5 // pred_fallthru
        _
      %p277 = scmp.lt.s32.totalorder %s18, 2
      // Predicated region
      $region45: #{tpu_custom_call.1} parent=5 // pred_check
        %p278 = pneg %p277
      $region46: #{tpu_custom_call.1} parent=5 // pred_check_branch
        %280 = sbr.rel (%p278) target = $region48
      $region47: #{tpu_custom_call.1} parent=5 // pred_region
        // Predicated region
        $region49: #{tpu_custom_call.1} parent=47 // pred_check
          %p281 = pneg %p38
        $region50: #{tpu_custom_call.1} parent=47 // pred_check_branch
          %283 = sbr.rel (%p281) target = $region52
        $region51: #{tpu_custom_call.1} parent=47 // pred_region
          %s284 = smul.u32 16, %s18
          %p285 = scmp.lt.s32.totalorder %s284, 31
          %s286 = scalar_select %p285, %s284, 31
          %s287 = smul.addr %s286, 8
          %s288 = scalar_lea.vmem %s0, %s287
          %s289 = smul.u32 16, %s18
        $region52: #{tpu_custom_call.1} parent=47 // pred_fallthru
          _
      $region48: #{tpu_custom_call.1} parent=5 // pred_fallthru
        _
      %p290 = scmp.le.s32.totalorder 1, %s18
      %p291 = scmp.lt.s32.totalorder %s18, 3
      %p292 = pnand %p290, %p291
      %p293 = pneg %p292
      // Predicated region
      $region53: #{tpu_custom_call.1} parent=5 // pred_check
        _
      $region54: #{tpu_custom_call.1} parent=5 // pred_check_branch
        %295 = sbr.rel (%p292) target = $region56
      $region55: #{tpu_custom_call.1} parent=5 // pred_region
        %s296 = ssub.s32 %s18, 1
        %s297 = smul.u32 16, %s23
        %p298 = scmp.lt.s32.totalorder %s297, 31
        %s299 = scalar_select %p298, %s297, 31
        %s300 = smul.addr %s299, 8
        %s301 = scalar_lea.vmem %s0, %s300
        %p302 = pneg %p44
        %p303 = pneg %p41
        %p304 = pneg %p65
        %p305 = pneg %p62
        %p306 = pneg %p86
        %p307 = pneg %p83
        %p308 = pneg %p107
        %p309 = pneg %p104
        %p310 = pneg %p128
        %p311 = pneg %p125
        %p312 = pneg %p149
        %p313 = pneg %p146
        %p314 = pneg %p170
        %p315 = pneg %p167
        %p316 = pneg %p191
        %p317 = pneg %p188
        %p318 = pneg %p212
        %p319 = pneg %p209
        %p320 = pneg %p238
        %p321 = pneg %p235
        %s322 = sand.u32 %s225, 1
        %s323 = scalar_lea.sflag [#allocation3], %s322
        %s324 = sand.u32 %s225, 1
        %s325 = smul.addr %s324, 128
        %s326 = scalar_lea.vmem [#allocation2], %s325
        %s327 = smul.u32 16, %s23
        %p328 = scmp.lt.s32.totalorder %s327, 31
        %s329 = scalar_select %p328, %s327, 31
        %s330 = smul.addr %s329, 8
        %s331 = scalar_lea.vmem %s0, %s330
        %s332 = smul.u32 16, %s23
        %s333 = smul.u32 8, %s23
        %v334 = vld [vmem:[%s331] sm:$0xff]
        %v335 = vld [vmem:[%s331 + $0x8] sm:$0xff]
        %v336 = vld [vmem:[%s331 + $0x10] sm:$0xff]
        %v337 = vld [vmem:[%s331 + $0x18] sm:$0xff]
        %v338 = vld [vmem:[%s331 + $0x20] sm:$0xff]
        %v339 = vld [vmem:[%s331 + $0x28] sm:$0xff]
        %v340 = vld [vmem:[%s331 + $0x30] sm:$0xff]
        %v341 = vld [vmem:[%s331 + $0x38] sm:$0xff]
        %v342 = vld [vmem:[%s331 + $0x40] sm:$0xff]
        %v343 = vld [vmem:[%s331 + $0x48] sm:$0xff]
        %v344 = vld [vmem:[%s331 + $0x50] sm:$0xff]
        %v345 = vld [vmem:[%s331 + $0x58] sm:$0xff]
        %v346 = vld [vmem:[%s331 + $0x60] sm:$0xff]
        %v347 = vld [vmem:[%s331 + $0x68] sm:$0xff]
        %v348 = vld [vmem:[%s331 + $0x70] sm:$0xff]
        %v349 = vld [vmem:[%s331 + $0x78] sm:$0xff]
        %v350 = vld [vmem:[%s3] sm:$0xff]
        %v351 = vld [vmem:[%s3 + $0x8] sm:$0xff]
        %v352 = vld [vmem:[%s4] sm:$0x1]
        %v354 = vlaneseq
        %v355 = vshrl.u32 %v354, 7
        %v356 = vsub.s32 0, %v355
        %v357 = vrot.slane %v352, %v356
        %vm359 = vcmask 130048
        %v361 = vsel %vm359, %v334, 0
        %v364 = vsel %vm359, %v335, 0
        %v367 = vsel %vm359, %v336, 0
        %v370 = vsel %vm359, %v337, 0
        %v373 = vsel %vm359, %v338, 0
        %v376 = vsel %vm359, %v339, 0
        %v379 = vsel %vm359, %v340, 0
        %v382 = vsel %vm359, %v341, 0
        %v385 = vsel %vm359, %v342, 0
        %v388 = vsel %vm359, %v343, 0
        %v391 = vsel %vm359, %v344, 0
        %v394 = vsel %vm359, %v345, 0
        %v397 = vsel %vm359, %v346, 0
        %v400 = vsel %vm359, %v347, 0
        %v403 = vsel %vm359, %v348, 0
        %v406 = vsel %vm359, %v349, 0
        %408 = vmatprep.subr.mxu0 0.0
        %409 = vmatpush1.msra.mxu0 %v350
        %410 = vmatprep.subr.mxu0 0.0
        %411 = vmatpush1.msra.mxu0 %v351
        %412 = vmatprep.subr.mxu0 0.0
        %413 = vmatpush1.msra.mxu0 0.0
        %414 = vmatprep.subr.mxu0 0.0
        %415 = vmatpush1.msra.mxu0 0.0
        %416 = vmatprep.subr.mxu0 0.0
        %417 = vmatpush1.msra.mxu0 0.0
        %418 = vmatprep.subr.mxu0 0.0
        %419 = vmatpush1.msra.mxu0 0.0
        %420 = vmatprep.subr.mxu0 0.0
        %421 = vmatpush1.msra.mxu0 0.0
        %422 = vmatprep.subr.mxu0 0.0
        %423 = vmatpush1.msra.mxu0 0.0
        %424 = vmatprep.subr.mxu0 0.0
        %425 = vmatpush1.msra.mxu0 0.0
        %426 = vmatprep.subr.mxu0 0.0
        %427 = vmatpush1.msra.mxu0 0.0
        %428 = vmatprep.subr.mxu0 0.0
        %429 = vmatpush1.msra.mxu0 0.0
        %430 = vmatprep.subr.mxu0 0.0
        %431 = vmatpush1.msra.mxu0 0.0
        %432 = vmatprep.subr.mxu0 0.0
        %433 = vmatpush1.msra.mxu0 0.0
        %434 = vmatprep.subr.mxu0 0.0
        %435 = vmatpush1.msra.mxu0 0.0
        %436 = vmatprep.subr.mxu0 0.0
        %437 = vmatpush1.msra.mxu0 0.0
        %438 = vmatprep.subr.mxu0 0.0
        %439 = vmatpush1.msra.mxu0 0.0
        %440 = vmatprep.subr.mxu0 0.0
        %441 = vmatpush1.msra.mxu0 0.0
        %442 = vmatprep.subr.mxu0 0.0
        %443 = vmatpush1.msra.mxu0 0.0
        %444 = vmatprep.subr.mxu0 0.0
        %445 = vmatpush1.msra.mxu0 0.0
        %446 = vmatprep.subr.mxu0 0.0
        %447 = vmatpush1.msra.mxu0 0.0
        %448 = vmatprep.subr.mxu0 0.0
        %449 = vmatpush1.msra.mxu0 0.0
        %450 = vmatprep.subr.mxu0 0.0
        %451 = vmatpush1.msra.mxu0 0.0
        %452 = vmatprep.subr.mxu0 0.0
        %453 = vmatpush1.msra.mxu0 0.0
        %454 = vmatprep.subr.mxu0 0.0
        %455 = vmatpush1.msra.mxu0 0.0
        %456 = vmatprep.subr.mxu0 0.0
        %457 = vmatpush1.msra.mxu0 0.0
        %458 = vmatprep.subr.mxu0 0.0
        %459 = vmatpush1.msra.mxu0 0.0
        %460 = vmatprep.subr.mxu0 0.0
        %461 = vmatpush1.msra.mxu0 0.0
        %462 = vmatprep.subr.mxu0 0.0
        %463 = vmatpush1.msra.mxu0 0.0
        %464 = vmatprep.subr.mxu0 0.0
        %465 = vmatpush1.msra.mxu0 0.0
        %466 = vmatprep.subr.mxu0 0.0
        %467 = vmatpush1.msra.mxu0 0.0
        %468 = vmatprep.subr.mxu0 0.0
        %469 = vmatpush1.msra.mxu0 0.0
        %470 = vmatprep.subr.mxu0 0.0
        %471 = vmatpush1.msra.mxu0 0.0
        %472 = vmatprep.mubr.f32.mxu0 0.0
        %473 = vmatmul.mubr.f32.gmra.mrb[0].mxu0 %v361
        %v474 = vpop.f32.mrb[0].mxu0
        %v475 = vadd.f32 %v357, %v474
        %v476 = vpop.f32.mrb[0].mxu0
        %477 = vmatprep.mubr.f32.mxu0 0.0
        %478 = vmatmul.mubr.f32.gmra.mrb[0].mxu0 %v364
        %v479 = vpop.f32.mrb[0].mxu0
        %v480 = vadd.f32 %v357, %v479
        %v481 = vpop.f32.mrb[0].mxu0
        %482 = vmatprep.mubr.f32.mxu0 0.0
        %483 = vmatmul.mubr.f32.gmra.mrb[0].mxu0 %v367
        %v484 = vpop.f32.mrb[0].mxu0
        %v485 = vadd.f32 %v357, %v484
        %v486 = vpop.f32.mrb[0].mxu0
        %487 = vmatprep.mubr.f32.mxu0 0.0
        %488 = vmatmul.mubr.f32.gmra.mrb[0].mxu0 %v370
        %v489 = vpop.f32.mrb[0].mxu0
        %v490 = vadd.f32 %v357, %v489
        %v491 = vpop.f32.mrb[0].mxu0
        %492 = vmatprep.mubr.f32.mxu0 0.0
        %493 = vmatmul.mubr.f32.gmra.mrb[0].mxu0 %v373
        %v494 = vpop.f32.mrb[0].mxu0
        %v495 = vadd.f32 %v357, %v494
        %v496 = vpop.f32.mrb[0].mxu0
        %497 = vmatprep.mubr.f32.mxu0 0.0
        %498 = vmatmul.mubr.f32.gmra.mrb[0].mxu0 %v376
        %v499 = vpop.f32.mrb[0].mxu0
        %v500 = vadd.f32 %v357, %v499
        %v501 = vpop.f32.mrb[0].mxu0
        %502 = vmatprep.mubr.f32.mxu0 0.0
        %503 = vmatmul.mubr.f32.gmra.mrb[0].mxu0 %v379
        %v504 = vpop.f32.mrb[0].mxu0
        %v505 = vadd.f32 %v357, %v504
        %v506 = vpop.f32.mrb[0].mxu0
        %507 = vmatprep.mubr.f32.mxu0 0.0
        %508 = vmatmul.mubr.f32.gmra.mrb[0].mxu0 %v382
        %v509 = vpop.f32.mrb[0].mxu0
        %v510 = vadd.f32 %v357, %v509
        %v511 = vpop.f32.mrb[0].mxu0
        %512 = vmatprep.mubr.f32.mxu0 0.0
        %513 = vmatmul.mubr.f32.gmra.mrb[0].mxu0 %v385
        %v514 = vpop.f32.mrb[0].mxu0
        %v515 = vadd.f32 %v357, %v514
        %v516 = vpop.f32.mrb[0].mxu0
        %517 = vmatprep.mubr.f32.mxu0 0.0
        %518 = vmatmul.mubr.f32.gmra.mrb[0].mxu0 %v388
        %v519 = vpop.f32.mrb[0].mxu0
        %v520 = vadd.f32 %v357, %v519
        %v521 = vpop.f32.mrb[0].mxu0
        %522 = vmatprep.mubr.f32.mxu0 0.0
        %523 = vmatmul.mubr.f32.gmra.mrb[0].mxu0 %v391
        %v524 = vpop.f32.mrb[0].mxu0
        %v525 = vadd.f32 %v357, %v524
        %v526 = vpop.f32.mrb[0].mxu0
        %527 = vmatprep.mubr.f32.mxu0 0.0
        %528 = vmatmul.mubr.f32.gmra.mrb[0].mxu0 %v394
        %v529 = vpop.f32.mrb[0].mxu0
        %v530 = vadd.f32 %v357, %v529
        %v531 = vpop.f32.mrb[0].mxu0
        %532 = vmatprep.mubr.f32.mxu0 0.0
        %533 = vmatmul.mubr.f32.gmra.mrb[0].mxu0 %v397
        %v534 = vpop.f32.mrb[0].mxu0
        %v535 = vadd.f32 %v357, %v534
        %v536 = vpop.f32.mrb[0].mxu0
        %537 = vmatprep.mubr.f32.mxu0 0.0
        %538 = vmatmul.mubr.f32.gmra.mrb[0].mxu0 %v400
        %v539 = vpop.f32.mrb[0].mxu0
        %v540 = vadd.f32 %v357, %v539
        %v541 = vpop.f32.mrb[0].mxu0
        %542 = vmatprep.mubr.f32.mxu0 0.0
        %543 = vmatmul.mubr.f32.gmra.mrb[0].mxu0 %v403
        %v544 = vpop.f32.mrb[0].mxu0
        %v545 = vadd.f32 %v357, %v544
        %v546 = vpop.f32.mrb[0].mxu0
        %547 = vmatprep.mubr.f32.mxu0 0.0
        %548 = vmatmul.mubr.f32.gmra.mrb[0].mxu0 %v406
        %v549 = vpop.f32.mrb[0].mxu0
        %v550 = vadd.f32 %v357, %v549
        %v551 = vpop.f32.mrb[0].mxu0
        %552 = vdwg.mxu0
        %v553 = vld [vmem:[%s1] sm:$0xff]
        %v554 = vld [vmem:[%s1 + $0x8] sm:$0xff]
        %v555 = vld [vmem:[%s1 + $0x10] sm:$0xff]
        %v556 = vld [vmem:[%s1 + $0x18] sm:$0xff]
        %v557 = vld [vmem:[%s1 + $0x20] sm:$0xff]
        %v558 = vld [vmem:[%s1 + $0x28] sm:$0xff]
        %v559 = vld [vmem:[%s1 + $0x30] sm:$0xff]
        %v560 = vld [vmem:[%s1 + $0x38] sm:$0xff]
        %v561 = vld [vmem:[%s1 + $0x40] sm:$0xff]
        %v562 = vld [vmem:[%s1 + $0x48] sm:$0xff]
        %v563 = vld [vmem:[%s1 + $0x50] sm:$0xff]
        %v564 = vld [vmem:[%s1 + $0x58] sm:$0xff]
        %v565 = vld [vmem:[%s1 + $0x60] sm:$0xff]
        %v566 = vld [vmem:[%s1 + $0x68] sm:$0xff]
        %v567 = vld [vmem:[%s1 + $0x70] sm:$0xff]
        %v568 = vld [vmem:[%s1 + $0x78] sm:$0xff]
        %v569 = vld [vmem:[%s1 + $0x80] sm:$0xff]
        %v570 = vld [vmem:[%s1 + $0x88] sm:$0xff]
        %v571 = vld [vmem:[%s1 + $0x90] sm:$0xff]
        %v572 = vld [vmem:[%s1 + $0x98] sm:$0xff]
        %v573 = vld [vmem:[%s1 + $0xa0] sm:$0xff]
        %v574 = vld [vmem:[%s1 + $0xa8] sm:$0xff]
        %v575 = vld [vmem:[%s1 + $0xb0] sm:$0xff]
        %v576 = vld [vmem:[%s1 + $0xb8] sm:$0xff]
        %v577 = vld [vmem:[%s1 + $0xc0] sm:$0xff]
        %v578 = vld [vmem:[%s1 + $0xc8] sm:$0xff]
        %v579 = vld [vmem:[%s1 + $0xd0] sm:$0xff]
        %v580 = vld [vmem:[%s1 + $0xd8] sm:$0xff]
        %v581 = vld [vmem:[%s1 + $0xe0] sm:$0xff]
        %v582 = vld [vmem:[%s1 + $0xe8] sm:$0xff]
        %v583 = vld [vmem:[%s1 + $0xf0] sm:$0xff]
        %v584 = vld [vmem:[%s1 + $0xf8] sm:$0xff]
        %v585 = vld [vmem:[%s5] sm:$0xff]
        %v586 = vld [vmem:[%s5 + $0x8] sm:$0xff]
        %v587 = vmul.f32 %v334, %v585
        %v588 = vmul.f32 %v335, %v586
        %v589 = vmul.f32 %v336, %v585
        %v590 = vmul.f32 %v337, %v586
        %v591 = vmul.f32 %v338, %v585
        %v592 = vmul.f32 %v339, %v586
        %v593 = vmul.f32 %v340, %v585
        %v594 = vmul.f32 %v341, %v586
        %v595 = vmul.f32 %v342, %v585
        %v596 = vmul.f32 %v343, %v586
        %v597 = vmul.f32 %v344, %v585
        %v598 = vmul.f32 %v345, %v586
        %v599 = vmul.f32 %v346, %v585
        %v600 = vmul.f32 %v347, %v586
        %v601 = vmul.f32 %v348, %v585
        %v602 = vmul.f32 %v349, %v586
        %v603 = vsel %vm359, %v587, 0.0
        %604 = vadd.xlane.f32.xlu0 %v603
        %v605 = vpop.xlane.xlu0 %604
        %v606 = vsel %vm359, %v588, 0.0
        %607 = vadd.xlane.f32.xlu0 %v606
        %v608 = vpop.xlane.xlu0 %607
        %v609 = vsel %vm359, %v589, 0.0
        %610 = vadd.xlane.f32.xlu0 %v609
        %v611 = vpop.xlane.xlu0 %610
        %v612 = vsel %vm359, %v590, 0.0
        %613 = vadd.xlane.f32.xlu0 %v612
        %v614 = vpop.xlane.xlu0 %613
        %v615 = vsel %vm359, %v591, 0.0
        %616 = vadd.xlane.f32.xlu0 %v615
        %v617 = vpop.xlane.xlu0 %616
        %v618 = vsel %vm359, %v592, 0.0
        %619 = vadd.xlane.f32.xlu0 %v618
        %v620 = vpop.xlane.xlu0 %619
        %v621 = vsel %vm359, %v593, 0.0
        %622 = vadd.xlane.f32.xlu0 %v621
        %v623 = vpop.xlane.xlu0 %622
        %v624 = vsel %vm359, %v594, 0.0
        %625 = vadd.xlane.f32.xlu0 %v624
        %v626 = vpop.xlane.xlu0 %625
        %v627 = vsel %vm359, %v595, 0.0
        %628 = vadd.xlane.f32.xlu0 %v627
        %v629 = vpop.xlane.xlu0 %628
        %v630 = vsel %vm359, %v596, 0.0
        %631 = vadd.xlane.f32.xlu0 %v630
        %v632 = vpop.xlane.xlu0 %631
        %v633 = vsel %vm359, %v597, 0.0
        %634 = vadd.xlane.f32.xlu0 %v633
        %v635 = vpop.xlane.xlu0 %634
        %v636 = vsel %vm359, %v598, 0.0
        %637 = vadd.xlane.f32.xlu0 %v636
        %v638 = vpop.xlane.xlu0 %637
        %v639 = vsel %vm359, %v599, 0.0
        %640 = vadd.xlane.f32.xlu0 %v639
        %v641 = vpop.xlane.xlu0 %640
        %v642 = vsel %vm359, %v600, 0.0
        %643 = vadd.xlane.f32.xlu0 %v642
        %v644 = vpop.xlane.xlu0 %643
        %v645 = vsel %vm359, %v601, 0.0
        %646 = vadd.xlane.f32.xlu0 %v645
        %v647 = vpop.xlane.xlu0 %646
        %v648 = vsel %vm359, %v602, 0.0
        %649 = vadd.xlane.f32.xlu0 %v648
        %v650 = vpop.xlane.xlu0 %649
        %v651 = vld [vmem:[%s6] sm:$0xff]
        %v652 = vld [vmem:[%s6 + $0x8] sm:$0xff]
        %v653 = vadd.f32 %v605, %v651
        %v654 = vadd.f32 %v608, %v652
        %v655 = vadd.f32 %v611, %v651
        %v656 = vadd.f32 %v614, %v652
        %v657 = vadd.f32 %v617, %v651
        %v658 = vadd.f32 %v620, %v652
        %v659 = vadd.f32 %v623, %v651
        %v660 = vadd.f32 %v626, %v652
        %v661 = vadd.f32 %v629, %v651
        %v662 = vadd.f32 %v632, %v652
        %v663 = vadd.f32 %v635, %v651
        %v664 = vadd.f32 %v638, %v652
        %v665 = vadd.f32 %v641, %v651
        %v666 = vadd.f32 %v644, %v652
        %v667 = vadd.f32 %v647, %v651
        %v668 = vadd.f32 %v650, %v652
        %v669 = vld [vmem:[%s7] sm:$0xff]
        %v670 = vld [vmem:[%s7 + $0x8] sm:$0xff]
        %v671 = vmul.f32 %v553, %v669
        %v672 = vmul.f32 %v554, %v670
        %v673 = vmul.f32 %v555, %v669
        %v674 = vmul.f32 %v556, %v670
        %v675 = vmul.f32 %v557, %v669
        %v676 = vmul.f32 %v558, %v670
        %v677 = vmul.f32 %v559, %v669
        %v678 = vmul.f32 %v560, %v670
        %v679 = vmul.f32 %v561, %v669
        %v680 = vmul.f32 %v562, %v670
        %v681 = vmul.f32 %v563, %v669
        %v682 = vmul.f32 %v564, %v670
        %v683 = vmul.f32 %v565, %v669
        %v684 = vmul.f32 %v566, %v670
        %v685 = vmul.f32 %v567, %v669
        %v686 = vmul.f32 %v568, %v670
        %v687 = vmul.f32 %v569, %v669
        %v688 = vmul.f32 %v570, %v670
        %v689 = vmul.f32 %v571, %v669
        %v690 = vmul.f32 %v572, %v670
        %v691 = vmul.f32 %v573, %v669
        %v692 = vmul.f32 %v574, %v670
        %v693 = vmul.f32 %v575, %v669
        %v694 = vmul.f32 %v576, %v670
        %v695 = vmul.f32 %v577, %v669
        %v696 = vmul.f32 %v578, %v670
        %v697 = vmul.f32 %v579, %v669
        %v698 = vmul.f32 %v580, %v670
        %v699 = vmul.f32 %v581, %v669
        %v700 = vmul.f32 %v582, %v670
        %v701 = vmul.f32 %v583, %v669
        %v702 = vmul.f32 %v584, %v670
        %v703 = vsel %vm359, %v671, 0.0
        %704 = vadd.xlane.f32.xlu0 %v703
        %v705 = vpop.xlane.xlu0 %704
        %v706 = vsel %vm359, %v672, 0.0
        %707 = vadd.xlane.f32.xlu0 %v706
        %v708 = vpop.xlane.xlu0 %707
        %v709 = vsel %vm359, %v673, 0.0
        %710 = vadd.xlane.f32.xlu0 %v709
        %v711 = vpop.xlane.xlu0 %710
        %v712 = vsel %vm359, %v674, 0.0
        %713 = vadd.xlane.f32.xlu0 %v712
        %v714 = vpop.xlane.xlu0 %713
        %v715 = vsel %vm359, %v675, 0.0
        %716 = vadd.xlane.f32.xlu0 %v715
        %v717 = vpop.xlane.xlu0 %716
        %v718 = vsel %vm359, %v676, 0.0
        %719 = vadd.xlane.f32.xlu0 %v718
        %v720 = vpop.xlane.xlu0 %719
        %v721 = vsel %vm359, %v677, 0.0
        %722 = vadd.xlane.f32.xlu0 %v721
        %v723 = vpop.xlane.xlu0 %722
        %v724 = vsel %vm359, %v678, 0.0
        %725 = vadd.xlane.f32.xlu0 %v724
        %v726 = vpop.xlane.xlu0 %725
        %v727 = vsel %vm359, %v679, 0.0
        %728 = vadd.xlane.f32.xlu0 %v727
        %v729 = vpop.xlane.xlu0 %728
        %v730 = vsel %vm359, %v680, 0.0
        %731 = vadd.xlane.f32.xlu0 %v730
        %v732 = vpop.xlane.xlu0 %731
        %v733 = vsel %vm359, %v681, 0.0
        %734 = vadd.xlane.f32.xlu0 %v733
        %v735 = vpop.xlane.xlu0 %734
        %v736 = vsel %vm359, %v682, 0.0
        %737 = vadd.xlane.f32.xlu0 %v736
        %v738 = vpop.xlane.xlu0 %737
        %v739 = vsel %vm359, %v683, 0.0
        %740 = vadd.xlane.f32.xlu0 %v739
        %v741 = vpop.xlane.xlu0 %740
        %v742 = vsel %vm359, %v684, 0.0
        %743 = vadd.xlane.f32.xlu0 %v742
        %v744 = vpop.xlane.xlu0 %743
        %v745 = vsel %vm359, %v685, 0.0
        %746 = vadd.xlane.f32.xlu0 %v745
        %v747 = vpop.xlane.xlu0 %746
        %v748 = vsel %vm359, %v686, 0.0
        %749 = vadd.xlane.f32.xlu0 %v748
        %v750 = vpop.xlane.xlu0 %749
        %v751 = vsel %vm359, %v687, 0.0
        %752 = vadd.xlane.f32.xlu0 %v751
        %v753 = vpop.xlane.xlu0 %752
        %v754 = vsel %vm359, %v688, 0.0
        %755 = vadd.xlane.f32.xlu0 %v754
        %v756 = vpop.xlane.xlu0 %755
        %v757 = vsel %vm359, %v689, 0.0
        %758 = vadd.xlane.f32.xlu0 %v757
        %v759 = vpop.xlane.xlu0 %758
        %v760 = vsel %vm359, %v690, 0.0
        %761 = vadd.xlane.f32.xlu0 %v760
        %v762 = vpop.xlane.xlu0 %761
        %v763 = vsel %vm359, %v691, 0.0
        %764 = vadd.xlane.f32.xlu0 %v763
        %v765 = vpop.xlane.xlu0 %764
        %v766 = vsel %vm359, %v692, 0.0
        %767 = vadd.xlane.f32.xlu0 %v766
        %v768 = vpop.xlane.xlu0 %767
        %v769 = vsel %vm359, %v693, 0.0
        %770 = vadd.xlane.f32.xlu0 %v769
        %v771 = vpop.xlane.xlu0 %770
        %v772 = vsel %vm359, %v694, 0.0
        %773 = vadd.xlane.f32.xlu0 %v772
        %v774 = vpop.xlane.xlu0 %773
        %v775 = vsel %vm359, %v695, 0.0
        %776 = vadd.xlane.f32.xlu0 %v775
        %v777 = vpop.xlane.xlu0 %776
        %v778 = vsel %vm359, %v696, 0.0
        %779 = vadd.xlane.f32.xlu0 %v778
        %v780 = vpop.xlane.xlu0 %779
        %v781 = vsel %vm359, %v697, 0.0
        %782 = vadd.xlane.f32.xlu0 %v781
        %v783 = vpop.xlane.xlu0 %782
        %v784 = vsel %vm359, %v698, 0.0
        %785 = vadd.xlane.f32.xlu0 %v784
        %v786 = vpop.xlane.xlu0 %785
        %v787 = vsel %vm359, %v699, 0.0
        %788 = vadd.xlane.f32.xlu0 %v787
        %v789 = vpop.xlane.xlu0 %788
        %v790 = vsel %vm359, %v700, 0.0
        %791 = vadd.xlane.f32.xlu0 %v790
        %v792 = vpop.xlane.xlu0 %791
        %v793 = vsel %vm359, %v701, 0.0
        %794 = vadd.xlane.f32.xlu0 %v793
        %v795 = vpop.xlane.xlu0 %794
        %v796 = vsel %vm359, %v702, 0.0
        %797 = vadd.xlane.f32.xlu0 %v796
        %v798 = vpop.xlane.xlu0 %797
        %v799 = vld [vmem:[%s8] sm:$0x1]
        %v801 = vlaneseq
        %v802 = vshrl.u32 %v801, 7
        %v803 = vsub.s32 0, %v802
        %v804 = vrot.slane %v799, %v803
        %806 = vbcast.lane.b32.xlu0 %v804, 256
        %v807 = vpop.permute.xlu0 %806
        %s809 = sor.u32 256, 8
        %810 = vbcast.lane.b32.xlu0 %v804, %s809
        %v811 = vpop.permute.xlu0 %810
        %v814 = vadd.f32 %v705, %v807
        %v815 = vadd.f32 %v708, %v811
        %v816 = vadd.f32 %v711, %v807
        %v817 = vadd.f32 %v714, %v811
        %v818 = vadd.f32 %v717, %v807
        %v819 = vadd.f32 %v720, %v811
        %v820 = vadd.f32 %v723, %v807
        %v821 = vadd.f32 %v726, %v811
        %v822 = vadd.f32 %v729, %v807
        %v823 = vadd.f32 %v732, %v811
        %v824 = vadd.f32 %v735, %v807
        %v825 = vadd.f32 %v738, %v811
        %v826 = vadd.f32 %v741, %v807
        %v827 = vadd.f32 %v744, %v811
        %v828 = vadd.f32 %v747, %v807
        %v829 = vadd.f32 %v750, %v811
        %v830 = vadd.f32 %v753, %v807
        %v831 = vadd.f32 %v756, %v811
        %v832 = vadd.f32 %v759, %v807
        %v833 = vadd.f32 %v762, %v811
        %v834 = vadd.f32 %v765, %v807
        %v835 = vadd.f32 %v768, %v811
        %v836 = vadd.f32 %v771, %v807
        %v837 = vadd.f32 %v774, %v811
        %v838 = vadd.f32 %v777, %v807
        %v839 = vadd.f32 %v780, %v811
        %v840 = vadd.f32 %v783, %v807
        %v841 = vadd.f32 %v786, %v811
        %v842 = vadd.f32 %v789, %v807
        %v843 = vadd.f32 %v792, %v811
        %v844 = vadd.f32 %v795, %v807
        %v845 = vadd.f32 %v798, %v811
        %878 = vset.pattern.permute.xlu0 0
        %879 = vperm.xlu0 %878, %v814
        %v880 = vpop.permute.xlu0 %879
        %881 = vset.pattern.permute.xlu0 0
        %882 = vperm.xlu0 %881, %v815
        %v883 = vpop.permute.xlu0 %882
        %884 = vset.pattern.permute.xlu0 0
        %885 = vperm.xlu0 %884, %v816
        %v886 = vpop.permute.xlu0 %885
        %887 = vset.pattern.permute.xlu0 0
        %888 = vperm.xlu0 %887, %v817
        %v889 = vpop.permute.xlu0 %888
        %890 = vset.pattern.permute.xlu0 0
        %891 = vperm.xlu0 %890, %v818
        %v892 = vpop.permute.xlu0 %891
        %893 = vset.pattern.permute.xlu0 0
        %894 = vperm.xlu0 %893, %v819
        %v895 = vpop.permute.xlu0 %894
        %896 = vset.pattern.permute.xlu0 0
        %897 = vperm.xlu0 %896, %v820
        %v898 = vpop.permute.xlu0 %897
        %899 = vset.pattern.permute.xlu0 0
        %900 = vperm.xlu0 %899, %v821
        %v901 = vpop.permute.xlu0 %900
        %902 = vset.pattern.permute.xlu0 0
        %903 = vperm.xlu0 %902, %v822
        %v904 = vpop.permute.xlu0 %903
        %905 = vset.pattern.permute.xlu0 0
        %906 = vperm.xlu0 %905, %v823
        %v907 = vpop.permute.xlu0 %906
        %908 = vset.pattern.permute.xlu0 0
        %909 = vperm.xlu0 %908, %v824
        %v910 = vpop.permute.xlu0 %909
        %911 = vset.pattern.permute.xlu0 0
        %912 = vperm.xlu0 %911, %v825
        %v913 = vpop.permute.xlu0 %912
        %914 = vset.pattern.permute.xlu0 0
        %915 = vperm.xlu0 %914, %v826
        %v916 = vpop.permute.xlu0 %915
        %917 = vset.pattern.permute.xlu0 0
        %918 = vperm.xlu0 %917, %v827
        %v919 = vpop.permute.xlu0 %918
        %920 = vset.pattern.permute.xlu0 0
        %921 = vperm.xlu0 %920, %v828
        %v922 = vpop.permute.xlu0 %921
        %923 = vset.pattern.permute.xlu0 0
        %924 = vperm.xlu0 %923, %v829
        %v925 = vpop.permute.xlu0 %924
        %926 = vset.pattern.permute.xlu0 0
        %927 = vperm.xlu0 %926, %v830
        %v928 = vpop.permute.xlu0 %927
        %929 = vset.pattern.permute.xlu0 0
        %930 = vperm.xlu0 %929, %v831
        %v931 = vpop.permute.xlu0 %930
        %932 = vset.pattern.permute.xlu0 0
        %933 = vperm.xlu0 %932, %v832
        %v934 = vpop.permute.xlu0 %933
        %935 = vset.pattern.permute.xlu0 0
        %936 = vperm.xlu0 %935, %v833
        %v937 = vpop.permute.xlu0 %936
        %938 = vset.pattern.permute.xlu0 0
        %939 = vperm.xlu0 %938, %v834
        %v940 = vpop.permute.xlu0 %939
        %941 = vset.pattern.permute.xlu0 0
        %942 = vperm.xlu0 %941, %v835
        %v943 = vpop.permute.xlu0 %942
        %944 = vset.pattern.permute.xlu0 0
        %945 = vperm.xlu0 %944, %v836
        %v946 = vpop.permute.xlu0 %945
        %947 = vset.pattern.permute.xlu0 0
        %948 = vperm.xlu0 %947, %v837
        %v949 = vpop.permute.xlu0 %948
        %950 = vset.pattern.permute.xlu0 0
        %951 = vperm.xlu0 %950, %v838
        %v952 = vpop.permute.xlu0 %951
        %953 = vset.pattern.permute.xlu0 0
        %954 = vperm.xlu0 %953, %v839
        %v955 = vpop.permute.xlu0 %954
        %956 = vset.pattern.permute.xlu0 0
        %957 = vperm.xlu0 %956, %v840
        %v958 = vpop.permute.xlu0 %957
        %959 = vset.pattern.permute.xlu0 0
        %960 = vperm.xlu0 %959, %v841
        %v961 = vpop.permute.xlu0 %960
        %962 = vset.pattern.permute.xlu0 0
        %963 = vperm.xlu0 %962, %v842
        %v964 = vpop.permute.xlu0 %963
        %965 = vset.pattern.permute.xlu0 0
        %966 = vperm.xlu0 %965, %v843
        %v967 = vpop.permute.xlu0 %966
        %968 = vset.pattern.permute.xlu0 0
        %969 = vperm.xlu0 %968, %v844
        %v970 = vpop.permute.xlu0 %969
        %971 = vset.pattern.permute.xlu0 0
        %972 = vperm.xlu0 %971, %v845
        %v973 = vpop.permute.xlu0 %972
        %v974 = vlaneseq
        %v975 = vand.u32 %v974, 127
        %v976 = vlaneseq
        %v977 = vshrl.u32 %v976, 7
        %v978 = vsub.s32 %v975, %v977
        %v979 = vrot.slane %v880, %v978
        %v980 = vadd.s32 %v975, 4294967288
        %v981 = vlaneseq
        %v982 = vshrl.u32 %v981, 7
        %v983 = vsub.s32 %v980, %v982
        %v984 = vrot.slane %v883, %v983
        %vm985 = vcmask 130112
        %v986 = vsel %vm985, %v984, %v979
        %v987 = vlaneseq
        %v988 = vshrl.u32 %v987, 7
        %v989 = vsub.s32 %v975, %v988
        %v990 = vrot.slane %v886, %v989
        %v991 = vlaneseq
        %v992 = vshrl.u32 %v991, 7
        %v993 = vsub.s32 %v980, %v992
        %v994 = vrot.slane %v889, %v993
        %v995 = vsel %vm985, %v994, %v990
        %v996 = vlaneseq
        %v997 = vshrl.u32 %v996, 7
        %v998 = vsub.s32 %v975, %v997
        %v999 = vrot.slane %v892, %v998
        %v1000 = vlaneseq
        %v1001 = vshrl.u32 %v1000, 7
        %v1002 = vsub.s32 %v980, %v1001
        %v1003 = vrot.slane %v895, %v1002
        %v1004 = vsel %vm985, %v1003, %v999
        %v1005 = vlaneseq
        %v1006 = vshrl.u32 %v1005, 7
        %v1007 = vsub.s32 %v975, %v1006
        %v1008 = vrot.slane %v898, %v1007
        %v1009 = vlaneseq
        %v1010 = vshrl.u32 %v1009, 7
        %v1011 = vsub.s32 %v980, %v1010
        %v1012 = vrot.slane %v901, %v1011
        %v1013 = vsel %vm985, %v1012, %v1008
        %v1014 = vlaneseq
        %v1015 = vshrl.u32 %v1014, 7
        %v1016 = vsub.s32 %v975, %v1015
        %v1017 = vrot.slane %v904, %v1016
        %v1018 = vlaneseq
        %v1019 = vshrl.u32 %v1018, 7
        %v1020 = vsub.s32 %v980, %v1019
        %v1021 = vrot.slane %v907, %v1020
        %v1022 = vsel %vm985, %v1021, %v1017
        %v1023 = vlaneseq
        %v1024 = vshrl.u32 %v1023, 7
        %v1025 = vsub.s32 %v975, %v1024
        %v1026 = vrot.slane %v910, %v1025
        %v1027 = vlaneseq
        %v1028 = vshrl.u32 %v1027, 7
        %v1029 = vsub.s32 %v980, %v1028
        %v1030 = vrot.slane %v913, %v1029
        %v1031 = vsel %vm985, %v1030, %v1026
        %v1032 = vlaneseq
        %v1033 = vshrl.u32 %v1032, 7
        %v1034 = vsub.s32 %v975, %v1033
        %v1035 = vrot.slane %v916, %v1034
        %v1036 = vlaneseq
        %v1037 = vshrl.u32 %v1036, 7
        %v1038 = vsub.s32 %v980, %v1037
        %v1039 = vrot.slane %v919, %v1038
        %v1040 = vsel %vm985, %v1039, %v1035
        %v1041 = vlaneseq
        %v1042 = vshrl.u32 %v1041, 7
        %v1043 = vsub.s32 %v975, %v1042
        %v1044 = vrot.slane %v922, %v1043
        %v1045 = vlaneseq
        %v1046 = vshrl.u32 %v1045, 7
        %v1047 = vsub.s32 %v980, %v1046
        %v1048 = vrot.slane %v925, %v1047
        %v1049 = vsel %vm985, %v1048, %v1044
        %v1050 = vlaneseq
        %v1051 = vshrl.u32 %v1050, 7
        %v1052 = vsub.s32 %v975, %v1051
        %v1053 = vrot.slane %v928, %v1052
        %v1054 = vlaneseq
        %v1055 = vshrl.u32 %v1054, 7
        %v1056 = vsub.s32 %v980, %v1055
        %v1057 = vrot.slane %v931, %v1056
        %v1058 = vsel %vm985, %v1057, %v1053
        %v1059 = vlaneseq
        %v1060 = vshrl.u32 %v1059, 7
        %v1061 = vsub.s32 %v975, %v1060
        %v1062 = vrot.slane %v934, %v1061
        %v1063 = vlaneseq
        %v1064 = vshrl.u32 %v1063, 7
        %v1065 = vsub.s32 %v980, %v1064
        %v1066 = vrot.slane %v937, %v1065
        %v1067 = vsel %vm985, %v1066, %v1062
        %v1068 = vlaneseq
        %v1069 = vshrl.u32 %v1068, 7
        %v1070 = vsub.s32 %v975, %v1069
        %v1071 = vrot.slane %v940, %v1070
        %v1072 = vlaneseq
        %v1073 = vshrl.u32 %v1072, 7
        %v1074 = vsub.s32 %v980, %v1073
        %v1075 = vrot.slane %v943, %v1074
        %v1076 = vsel %vm985, %v1075, %v1071
        %v1077 = vlaneseq
        %v1078 = vshrl.u32 %v1077, 7
        %v1079 = vsub.s32 %v975, %v1078
        %v1080 = vrot.slane %v946, %v1079
        %v1081 = vlaneseq
        %v1082 = vshrl.u32 %v1081, 7
        %v1083 = vsub.s32 %v980, %v1082
        %v1084 = vrot.slane %v949, %v1083
        %v1085 = vsel %vm985, %v1084, %v1080
        %v1086 = vlaneseq
        %v1087 = vshrl.u32 %v1086, 7
        %v1088 = vsub.s32 %v975, %v1087
        %v1089 = vrot.slane %v952, %v1088
        %v1090 = vlaneseq
        %v1091 = vshrl.u32 %v1090, 7
        %v1092 = vsub.s32 %v980, %v1091
        %v1093 = vrot.slane %v955, %v1092
        %v1094 = vsel %vm985, %v1093, %v1089
        %v1095 = vlaneseq
        %v1096 = vshrl.u32 %v1095, 7
        %v1097 = vsub.s32 %v975, %v1096
        %v1098 = vrot.slane %v958, %v1097
        %v1099 = vlaneseq
        %v1100 = vshrl.u32 %v1099, 7
        %v1101 = vsub.s32 %v980, %v1100
        %v1102 = vrot.slane %v961, %v1101
        %v1103 = vsel %vm985, %v1102, %v1098
        %v1104 = vlaneseq
        %v1105 = vshrl.u32 %v1104, 7
        %v1106 = vsub.s32 %v975, %v1105
        %v1107 = vrot.slane %v964, %v1106
        %v1108 = vlaneseq
        %v1109 = vshrl.u32 %v1108, 7
        %v1110 = vsub.s32 %v980, %v1109
        %v1111 = vrot.slane %v967, %v1110
        %v1112 = vsel %vm985, %v1111, %v1107
        %v1113 = vlaneseq
        %v1114 = vshrl.u32 %v1113, 7
        %v1115 = vsub.s32 %v975, %v1114
        %v1116 = vrot.slane %v970, %v1115
        %v1117 = vlaneseq
        %v1118 = vshrl.u32 %v1117, 7
        %v1119 = vsub.s32 %v980, %v1118
        %v1120 = vrot.slane %v973, %v1119
        %v1121 = vsel %vm985, %v1120, %v1116
        %vm1122 = vcmask 1041409
        %v1123 = vsel %vm1122, %v995, %v986
        %vm1124 = vcmask 1042434
        %v1125 = vsel %vm1124, %v1004, %v1123
        %vm1126 = vcmask 1043459
        %v1127 = vsel %vm1126, %v1013, %v1125
        %vm1128 = vcmask 1044484
        %v1129 = vsel %vm1128, %v1022, %v1127
        %vm1130 = vcmask 1045509
        %v1131 = vsel %vm1130, %v1031, %v1129
        %vm1132 = vcmask 1046534
        %v1133 = vsel %vm1132, %v1040, %v1131
        %vm1134 = vcmask 1047559
        %v1135 = vsel %vm1134, %v1049, %v1133
        %v1136 = vsel %vm1122, %v1067, %v1058
        %v1137 = vsel %vm1124, %v1076, %v1136
        %v1138 = vsel %vm1126, %v1085, %v1137
        %v1139 = vsel %vm1128, %v1094, %v1138
        %v1140 = vsel %vm1130, %v1103, %v1139
        %v1141 = vsel %vm1132, %v1112, %v1140
        %v1142 = vsel %vm1134, %v1121, %v1141
        %1145 = vxpose.xlu0.b32.start [1/16] %v1135, 128
        %1146 = vxpose.xlu0.b32.cont [2/16] %v1142, 128
        %1147 = vxpose.xlu0.b32.cont [3/16] 0.0, 128
        %1148 = vxpose.xlu0.b32.cont [4/16] 0.0, 128
        %1149 = vxpose.xlu0.b32.cont [5/16] 0.0, 128
        %1150 = vxpose.xlu0.b32.cont [6/16] 0.0, 128
        %1151 = vxpose.xlu0.b32.cont [7/16] 0.0, 128
        %1152 = vxpose.xlu0.b32.cont [8/16] 0.0, 128
        %1153 = vxpose.xlu0.b32.cont [9/16] 0.0, 128
        %1154 = vxpose.xlu0.b32.cont [10/16] 0.0, 128
        %1155 = vxpose.xlu0.b32.cont [11/16] 0.0, 128
        %1156 = vxpose.xlu0.b32.cont [12/16] 0.0, 128
        %1157 = vxpose.xlu0.b32.cont [13/16] 0.0, 128
        %1158 = vxpose.xlu0.b32.cont [14/16] 0.0, 128
        %1159 = vxpose.xlu0.b32.cont [15/16] 0.0, 128
        %1160 = vxpose.xlu0.b32.end [16/16] 0.0, 128
        %v1161 = vpop.trf.xlu0
        %v1162 = vpop.trf.xlu0
        %v1163 = vpop.trf.xlu0
        %v1164 = vpop.trf.xlu0
        %v1165 = vpop.trf.xlu0
        %v1166 = vpop.trf.xlu0
        %v1167 = vpop.trf.xlu0
        %v1168 = vpop.trf.xlu0
        %v1169 = vpop.trf.xlu0
        %v1170 = vpop.trf.xlu0
        %v1171 = vpop.trf.xlu0
        %v1172 = vpop.trf.xlu0
        %v1173 = vpop.trf.xlu0
        %v1174 = vpop.trf.xlu0
        %v1175 = vpop.trf.xlu0
        %v1176 = vpop.trf.xlu0
        %v1177 = vld [vmem:[%s2] sm:$0xff]
        %v1178 = vld [vmem:[%s2 + $0x8] sm:$0xff]
        %1180 = vset.pattern.permute.xlu0 0
        %1181 = vperm.xlu0 %1180, %v653
        %v1182 = vpop.permute.xlu0 %1181
        %1185 = vset.pattern.permute.xlu0 0
        %1186 = vperm.xlu0 %1185, %v654
        %v1187 = vpop.permute.xlu0 %1186
        %1190 = vset.pattern.permute.xlu0 0
        %1191 = vperm.xlu0 %1190, %v655
        %v1192 = vpop.permute.xlu0 %1191
        %1195 = vset.pattern.permute.xlu0 0
        %1196 = vperm.xlu0 %1195, %v656
        %v1197 = vpop.permute.xlu0 %1196
        %1200 = vset.pattern.permute.xlu0 0
        %1201 = vperm.xlu0 %1200, %v657
        %v1202 = vpop.permute.xlu0 %1201
        %1205 = vset.pattern.permute.xlu0 0
        %1206 = vperm.xlu0 %1205, %v658
        %v1207 = vpop.permute.xlu0 %1206
        %1210 = vset.pattern.permute.xlu0 0
        %1211 = vperm.xlu0 %1210, %v659
        %v1212 = vpop.permute.xlu0 %1211
        %1215 = vset.pattern.permute.xlu0 0
        %1216 = vperm.xlu0 %1215, %v660
        %v1217 = vpop.permute.xlu0 %1216
        %1220 = vset.pattern.permute.xlu0 0
        %1221 = vperm.xlu0 %1220, %v661
        %v1222 = vpop.permute.xlu0 %1221
        %1225 = vset.pattern.permute.xlu0 0
        %1226 = vperm.xlu0 %1225, %v662
        %v1227 = vpop.permute.xlu0 %1226
        %1230 = vset.pattern.permute.xlu0 0
        %1231 = vperm.xlu0 %1230, %v663
        %v1232 = vpop.permute.xlu0 %1231
        %1235 = vset.pattern.permute.xlu0 0
        %1236 = vperm.xlu0 %1235, %v664
        %v1237 = vpop.permute.xlu0 %1236
        %1240 = vset.pattern.permute.xlu0 0
        %1241 = vperm.xlu0 %1240, %v665
        %v1242 = vpop.permute.xlu0 %1241
        %1245 = vset.pattern.permute.xlu0 0
        %1246 = vperm.xlu0 %1245, %v666
        %v1247 = vpop.permute.xlu0 %1246
        %1250 = vset.pattern.permute.xlu0 0
        %1251 = vperm.xlu0 %1250, %v667
        %v1252 = vpop.permute.xlu0 %1251
        %1255 = vset.pattern.permute.xlu0 0
        %1256 = vperm.xlu0 %1255, %v668
        %v1257 = vpop.permute.xlu0 %1256
        %v1259 = vadd.f32 %v1182, %v1161
        %v1260 = vadd.f32 %v1187, %v1162
        %v1261 = vadd.f32 %v1192, %v1161
        %v1262 = vadd.f32 %v1197, %v1162
        %v1263 = vadd.f32 %v1202, %v1161
        %v1264 = vadd.f32 %v1207, %v1162
        %v1265 = vadd.f32 %v1212, %v1161
        %v1266 = vadd.f32 %v1217, %v1162
        %v1267 = vadd.f32 %v1222, %v1161
        %v1268 = vadd.f32 %v1227, %v1162
        %v1269 = vadd.f32 %v1232, %v1161
        %v1270 = vadd.f32 %v1237, %v1162
        %v1271 = vadd.f32 %v1242, %v1161
        %v1272 = vadd.f32 %v1247, %v1162
        %v1273 = vadd.f32 %v1252, %v1161
        %v1274 = vadd.f32 %v1257, %v1162
        %v1275 = vmul.f32 %v1177, %v1259
        %v1276 = vmul.f32 %v1178, %v1260
        %v1277 = vmul.f32 %v1177, %v1261
        %v1278 = vmul.f32 %v1178, %v1262
        %v1279 = vmul.f32 %v1177, %v1263
        %v1280 = vmul.f32 %v1178, %v1264
        %v1281 = vmul.f32 %v1177, %v1265
        %v1282 = vmul.f32 %v1178, %v1266
        %v1283 = vmul.f32 %v1177, %v1267
        %v1284 = vmul.f32 %v1178, %v1268
        %v1285 = vmul.f32 %v1177, %v1269
        %v1286 = vmul.f32 %v1178, %v1270
        %v1287 = vmul.f32 %v1177, %v1271
        %v1288 = vmul.f32 %v1178, %v1272
        %v1289 = vmul.f32 %v1177, %v1273
        %v1290 = vmul.f32 %v1178, %v1274
        %v1291 = vxor.u32 %v1275, 2147483648
        %v1292 = vxor.u32 %v1276, 2147483648
        %v1293 = vxor.u32 %v1277, 2147483648
        %v1294 = vxor.u32 %v1278, 2147483648
        %v1295 = vxor.u32 %v1279, 2147483648
        %v1296 = vxor.u32 %v1280, 2147483648
        %v1297 = vxor.u32 %v1281, 2147483648
        %v1298 = vxor.u32 %v1282, 2147483648
        %v1299 = vxor.u32 %v1283, 2147483648
        %v1300 = vxor.u32 %v1284, 2147483648
        %v1301 = vxor.u32 %v1285, 2147483648
        %v1302 = vxor.u32 %v1286, 2147483648
        %v1303 = vxor.u32 %v1287, 2147483648
        %v1304 = vxor.u32 %v1288, 2147483648
        %v1305 = vxor.u32 %v1289, 2147483648
        %v1306 = vxor.u32 %v1290, 2147483648
        %v1307 = vmul.f32 %v1291, 1.442695
        %v1308 = vpow.pop %v1307
        %v1309 = vmul.f32 %v1292, 1.442695
        %v1310 = vpow.pop %v1309
        %v1311 = vmul.f32 %v1293, 1.442695
        %v1312 = vpow.pop %v1311
        %v1313 = vmul.f32 %v1294, 1.442695
        %v1314 = vpow.pop %v1313
        %v1315 = vmul.f32 %v1295, 1.442695
        %v1316 = vpow.pop %v1315
        %v1317 = vmul.f32 %v1296, 1.442695
        %v1318 = vpow.pop %v1317
        %v1319 = vmul.f32 %v1297, 1.442695
        %v1320 = vpow.pop %v1319
        %v1321 = vmul.f32 %v1298, 1.442695
        %v1322 = vpow.pop %v1321
        %v1323 = vmul.f32 %v1299, 1.442695
        %v1324 = vpow.pop %v1323
        %v1325 = vmul.f32 %v1300, 1.442695
        %v1326 = vpow.pop %v1325
        %v1327 = vmul.f32 %v1301, 1.442695
        %v1328 = vpow.pop %v1327
        %v1329 = vmul.f32 %v1302, 1.442695
        %v1330 = vpow.pop %v1329
        %v1331 = vmul.f32 %v1303, 1.442695
        %v1332 = vpow.pop %v1331
        %v1333 = vmul.f32 %v1304, 1.442695
        %v1334 = vpow.pop %v1333
        %v1335 = vmul.f32 %v1305, 1.442695
        %v1336 = vpow.pop %v1335
        %v1337 = vmul.f32 %v1306, 1.442695
        %v1338 = vpow.pop %v1337
        %v1339 = vadd.f32 %v1308, 1.0
        %v1340 = vadd.f32 %v1310, 1.0
        %v1341 = vadd.f32 %v1312, 1.0
        %v1342 = vadd.f32 %v1314, 1.0
        %v1343 = vadd.f32 %v1316, 1.0
        %v1344 = vadd.f32 %v1318, 1.0
        %v1345 = vadd.f32 %v1320, 1.0
        %v1346 = vadd.f32 %v1322, 1.0
        %v1347 = vadd.f32 %v1324, 1.0
        %v1348 = vadd.f32 %v1326, 1.0
        %v1349 = vadd.f32 %v1328, 1.0
        %v1350 = vadd.f32 %v1330, 1.0
        %v1351 = vadd.f32 %v1332, 1.0
        %v1352 = vadd.f32 %v1334, 1.0
        %v1353 = vadd.f32 %v1336, 1.0
        %v1354 = vadd.f32 %v1338, 1.0
        %v1355 = vrcp.pop %v1339
        %v1356 = vmul.f32 1.0, %v1355
        %v1357 = vrcp.pop %v1340
        %v1358 = vmul.f32 1.0, %v1357
        %v1359 = vrcp.pop %v1341
        %v1360 = vmul.f32 1.0, %v1359
        %v1361 = vrcp.pop %v1342
        %v1362 = vmul.f32 1.0, %v1361
        %v1363 = vrcp.pop %v1343
        %v1364 = vmul.f32 1.0, %v1363
        %v1365 = vrcp.pop %v1344
        %v1366 = vmul.f32 1.0, %v1365
        %v1367 = vrcp.pop %v1345
        %v1368 = vmul.f32 1.0, %v1367
        %v1369 = vrcp.pop %v1346
        %v1370 = vmul.f32 1.0, %v1369
        %v1371 = vrcp.pop %v1347
        %v1372 = vmul.f32 1.0, %v1371
        %v1373 = vrcp.pop %v1348
        %v1374 = vmul.f32 1.0, %v1373
        %v1375 = vrcp.pop %v1349
        %v1376 = vmul.f32 1.0, %v1375
        %v1377 = vrcp.pop %v1350
        %v1378 = vmul.f32 1.0, %v1377
        %v1379 = vrcp.pop %v1351
        %v1380 = vmul.f32 1.0, %v1379
        %v1381 = vrcp.pop %v1352
        %v1382 = vmul.f32 1.0, %v1381
        %v1383 = vrcp.pop %v1353
        %v1384 = vmul.f32 1.0, %v1383
        %v1385 = vrcp.pop %v1354
        %v1386 = vmul.f32 1.0, %v1385
        %v1387 = vsub.f32 %v1356, 0.5
        %v1388 = vsub.f32 %v1358, 0.5
        %v1389 = vsub.f32 %v1360, 0.5
        %v1390 = vsub.f32 %v1362, 0.5
        %v1391 = vsub.f32 %v1364, 0.5
        %v1392 = vsub.f32 %v1366, 0.5
        %v1393 = vsub.f32 %v1368, 0.5
        %v1394 = vsub.f32 %v1370, 0.5
        %v1395 = vsub.f32 %v1372, 0.5
        %v1396 = vsub.f32 %v1374, 0.5
        %v1397 = vsub.f32 %v1376, 0.5
        %v1398 = vsub.f32 %v1378, 0.5
        %v1399 = vsub.f32 %v1380, 0.5
        %v1400 = vsub.f32 %v1382, 0.5
        %v1401 = vsub.f32 %v1384, 0.5
        %v1402 = vsub.f32 %v1386, 0.5
        %v1403 = vsel %vm359, %v1387, -inf
        %v1404 = vsel %vm359, %v1388, -inf
        %v1405 = vmax.f32 %v1403, %v1404
        %v1406 = vrot.slane %v1405, 4
        %v1407 = vmax.f32 %v1405, %v1406
        %v1408 = vrot.slane %v1407, 2
        %v1409 = vmax.f32 %v1407, %v1408
        %v1410 = vrot.slane %v1409, 1
        %v1411 = vmax.f32 %v1409, %v1410
        %v1412 = vsel %vm359, %v1389, -inf
        %v1413 = vsel %vm359, %v1390, -inf
        %v1414 = vmax.f32 %v1412, %v1413
        %v1415 = vrot.slane %v1414, 4
        %v1416 = vmax.f32 %v1414, %v1415
        %v1417 = vrot.slane %v1416, 2
        %v1418 = vmax.f32 %v1416, %v1417
        %v1419 = vrot.slane %v1418, 1
        %v1420 = vmax.f32 %v1418, %v1419
        %v1421 = vsel %vm359, %v1391, -inf
        %v1422 = vsel %vm359, %v1392, -inf
        %v1423 = vmax.f32 %v1421, %v1422
        %v1424 = vrot.slane %v1423, 4
        %v1425 = vmax.f32 %v1423, %v1424
        %v1426 = vrot.slane %v1425, 2
        %v1427 = vmax.f32 %v1425, %v1426
        %v1428 = vrot.slane %v1427, 1
        %v1429 = vmax.f32 %v1427, %v1428
        %v1430 = vsel %vm359, %v1393, -inf
        %v1431 = vsel %vm359, %v1394, -inf
        %v1432 = vmax.f32 %v1430, %v1431
        %v1433 = vrot.slane %v1432, 4
        %v1434 = vmax.f32 %v1432, %v1433
        %v1435 = vrot.slane %v1434, 2
        %v1436 = vmax.f32 %v1434, %v1435
        %v1437 = vrot.slane %v1436, 1
        %v1438 = vmax.f32 %v1436, %v1437
        %v1439 = vsel %vm359, %v1395, -inf
        %v1440 = vsel %vm359, %v1396, -inf
        %v1441 = vmax.f32 %v1439, %v1440
        %v1442 = vrot.slane %v1441, 4
        %v1443 = vmax.f32 %v1441, %v1442
        %v1444 = vrot.slane %v1443, 2
        %v1445 = vmax.f32 %v1443, %v1444
        %v1446 = vrot.slane %v1445, 1
        %v1447 = vmax.f32 %v1445, %v1446
        %v1448 = vsel %vm359, %v1397, -inf
        %v1449 = vsel %vm359, %v1398, -inf
        %v1450 = vmax.f32 %v1448, %v1449
        %v1451 = vrot.slane %v1450, 4
        %v1452 = vmax.f32 %v1450, %v1451
        %v1453 = vrot.slane %v1452, 2
        %v1454 = vmax.f32 %v1452, %v1453
        %v1455 = vrot.slane %v1454, 1
        %v1456 = vmax.f32 %v1454, %v1455
        %v1457 = vsel %vm359, %v1399, -inf
        %v1458 = vsel %vm359, %v1400, -inf
        %v1459 = vmax.f32 %v1457, %v1458
        %v1460 = vrot.slane %v1459, 4
        %v1461 = vmax.f32 %v1459, %v1460
        %v1462 = vrot.slane %v1461, 2
        %v1463 = vmax.f32 %v1461, %v1462
        %v1464 = vrot.slane %v1463, 1
        %v1465 = vmax.f32 %v1463, %v1464
        %v1466 = vsel %vm359, %v1401, -inf
        %v1467 = vsel %vm359, %v1402, -inf
        %v1468 = vmax.f32 %v1466, %v1467
        %v1469 = vrot.slane %v1468, 4
        %v1470 = vmax.f32 %v1468, %v1469
        %v1471 = vrot.slane %v1470, 2
        %v1472 = vmax.f32 %v1470, %v1471
        %v1473 = vrot.slane %v1472, 1
        %v1474 = vmax.f32 %v1472, %v1473
        %v1475 = vsub.f32 %v1387, %v1411
        %v1476 = vsub.f32 %v1388, %v1411
        %v1477 = vsub.f32 %v1389, %v1420
        %v1478 = vsub.f32 %v1390, %v1420
        %v1479 = vsub.f32 %v1391, %v1429
        %v1480 = vsub.f32 %v1392, %v1429
        %v1481 = vsub.f32 %v1393, %v1438
        %v1482 = vsub.f32 %v1394, %v1438
        %v1483 = vsub.f32 %v1395, %v1447
        %v1484 = vsub.f32 %v1396, %v1447
        %v1485 = vsub.f32 %v1397, %v1456
        %v1486 = vsub.f32 %v1398, %v1456
        %v1487 = vsub.f32 %v1399, %v1465
        %v1488 = vsub.f32 %v1400, %v1465
        %v1489 = vsub.f32 %v1401, %v1474
        %v1490 = vsub.f32 %v1402, %v1474
        %v1491 = vmul.f32 %v1475, 1.442695
        %v1492 = vpow.pop %v1491
        %v1493 = vmul.f32 %v1476, 1.442695
        %v1494 = vpow.pop %v1493
        %v1495 = vmul.f32 %v1477, 1.442695
        %v1496 = vpow.pop %v1495
        %v1497 = vmul.f32 %v1478, 1.442695
        %v1498 = vpow.pop %v1497
        %v1499 = vmul.f32 %v1479, 1.442695
        %v1500 = vpow.pop %v1499
        %v1501 = vmul.f32 %v1480, 1.442695
        %v1502 = vpow.pop %v1501
        %v1503 = vmul.f32 %v1481, 1.442695
        %v1504 = vpow.pop %v1503
        %v1505 = vmul.f32 %v1482, 1.442695
        %v1506 = vpow.pop %v1505
        %v1507 = vmul.f32 %v1483, 1.442695
        %v1508 = vpow.pop %v1507
        %v1509 = vmul.f32 %v1484, 1.442695
        %v1510 = vpow.pop %v1509
        %v1511 = vmul.f32 %v1485, 1.442695
        %v1512 = vpow.pop %v1511
        %v1513 = vmul.f32 %v1486, 1.442695
        %v1514 = vpow.pop %v1513
        %v1515 = vmul.f32 %v1487, 1.442695
        %v1516 = vpow.pop %v1515
        %v1517 = vmul.f32 %v1488, 1.442695
        %v1518 = vpow.pop %v1517
        %v1519 = vmul.f32 %v1489, 1.442695
        %v1520 = vpow.pop %v1519
        %v1521 = vmul.f32 %v1490, 1.442695
        %v1522 = vpow.pop %v1521
        %v1523 = vsel %vm359, %v1492, 0.0
        %v1524 = vsel %vm359, %v1494, 0.0
        %v1525 = vadd.f32 %v1523, %v1524
        %v1526 = vrot.slane %v1525, 4
        %v1527 = vadd.f32 %v1525, %v1526
        %v1528 = vrot.slane %v1527, 2
        %v1529 = vadd.f32 %v1527, %v1528
        %v1530 = vrot.slane %v1529, 1
        %v1531 = vadd.f32 %v1529, %v1530
        %v1532 = vsel %vm359, %v1496, 0.0
        %v1533 = vsel %vm359, %v1498, 0.0
        %v1534 = vadd.f32 %v1532, %v1533
        %v1535 = vrot.slane %v1534, 4
        %v1536 = vadd.f32 %v1534, %v1535
        %v1537 = vrot.slane %v1536, 2
        %v1538 = vadd.f32 %v1536, %v1537
        %v1539 = vrot.slane %v1538, 1
        %v1540 = vadd.f32 %v1538, %v1539
        %v1541 = vsel %vm359, %v1500, 0.0
        %v1542 = vsel %vm359, %v1502, 0.0
        %v1543 = vadd.f32 %v1541, %v1542
        %v1544 = vrot.slane %v1543, 4
        %v1545 = vadd.f32 %v1543, %v1544
        %v1546 = vrot.slane %v1545, 2
        %v1547 = vadd.f32 %v1545, %v1546
        %v1548 = vrot.slane %v1547, 1
        %v1549 = vadd.f32 %v1547, %v1548
        %v1550 = vsel %vm359, %v1504, 0.0
        %v1551 = vsel %vm359, %v1506, 0.0
        %v1552 = vadd.f32 %v1550, %v1551
        %v1553 = vrot.slane %v1552, 4
        %v1554 = vadd.f32 %v1552, %v1553
        %v1555 = vrot.slane %v1554, 2
        %v1556 = vadd.f32 %v1554, %v1555
        %v1557 = vrot.slane %v1556, 1
        %v1558 = vadd.f32 %v1556, %v1557
        %v1559 = vsel %vm359, %v1508, 0.0
        %v1560 = vsel %vm359, %v1510, 0.0
        %v1561 = vadd.f32 %v1559, %v1560
        %v1562 = vrot.slane %v1561, 4
        %v1563 = vadd.f32 %v1561, %v1562
        %v1564 = vrot.slane %v1563, 2
        %v1565 = vadd.f32 %v1563, %v1564
        %v1566 = vrot.slane %v1565, 1
        %v1567 = vadd.f32 %v1565, %v1566
        %v1568 = vsel %vm359, %v1512, 0.0
        %v1569 = vsel %vm359, %v1514, 0.0
        %v1570 = vadd.f32 %v1568, %v1569
        %v1571 = vrot.slane %v1570, 4
        %v1572 = vadd.f32 %v1570, %v1571
        %v1573 = vrot.slane %v1572, 2
        %v1574 = vadd.f32 %v1572, %v1573
        %v1575 = vrot.slane %v1574, 1
        %v1576 = vadd.f32 %v1574, %v1575
        %v1577 = vsel %vm359, %v1516, 0.0
        %v1578 = vsel %vm359, %v1518, 0.0
        %v1579 = vadd.f32 %v1577, %v1578
        %v1580 = vrot.slane %v1579, 4
        %v1581 = vadd.f32 %v1579, %v1580
        %v1582 = vrot.slane %v1581, 2
        %v1583 = vadd.f32 %v1581, %v1582
        %v1584 = vrot.slane %v1583, 1
        %v1585 = vadd.f32 %v1583, %v1584
        %v1586 = vsel %vm359, %v1520, 0.0
        %v1587 = vsel %vm359, %v1522, 0.0
        %v1588 = vadd.f32 %v1586, %v1587
        %v1589 = vrot.slane %v1588, 4
        %v1590 = vadd.f32 %v1588, %v1589
        %v1591 = vrot.slane %v1590, 2
        %v1592 = vadd.f32 %v1590, %v1591
        %v1593 = vrot.slane %v1592, 1
        %v1594 = vadd.f32 %v1592, %v1593
        %v1595 = vrcp.pop %v1531
        %v1596 = vrcp.pop %v1540
        %v1597 = vrcp.pop %v1549
        %v1598 = vrcp.pop %v1558
        %v1599 = vrcp.pop %v1567
        %v1600 = vrcp.pop %v1576
        %v1601 = vrcp.pop %v1585
        %v1602 = vrcp.pop %v1594
        %v1603 = vmul.f32 %v1492, %v1595
        %v1604 = vmul.f32 %v1494, %v1595
        %v1605 = vmul.f32 %v1496, %v1596
        %v1606 = vmul.f32 %v1498, %v1596
        %v1607 = vmul.f32 %v1500, %v1597
        %v1608 = vmul.f32 %v1502, %v1597
        %v1609 = vmul.f32 %v1504, %v1598
        %v1610 = vmul.f32 %v1506, %v1598
        %v1611 = vmul.f32 %v1508, %v1599
        %v1612 = vmul.f32 %v1510, %v1599
        %v1613 = vmul.f32 %v1512, %v1600
        %v1614 = vmul.f32 %v1514, %v1600
        %v1615 = vmul.f32 %v1516, %v1601
        %v1616 = vmul.f32 %v1518, %v1601
        %v1617 = vmul.f32 %v1520, %v1602
        %v1618 = vmul.f32 %v1522, %v1602
        %v1620 = vsel %vm359, %v1603, 0
        %v1623 = vsel %vm359, %v1604, 0
        %1625 = vmatprep.subr.mxu0 0.0
        %1626 = vmatpush1.msra.mxu0 %v475
        %1627 = vmatprep.subr.mxu0 0.0
        %1628 = vmatpush1.msra.mxu0 %v480
        %1629 = vmatprep.subr.mxu0 0.0
        %1630 = vmatpush1.msra.mxu0 0.0
        %1631 = vmatprep.subr.mxu0 0.0
        %1632 = vmatpush1.msra.mxu0 0.0
        %1633 = vmatprep.subr.mxu0 0.0
        %1634 = vmatpush1.msra.mxu0 0.0
        %1635 = vmatprep.subr.mxu0 0.0
        %1636 = vmatpush1.msra.mxu0 0.0
        %1637 = vmatprep.subr.mxu0 0.0
        %1638 = vmatpush1.msra.mxu0 0.0
        %1639 = vmatprep.subr.mxu0 0.0
        %1640 = vmatpush1.msra.mxu0 0.0
        %1641 = vmatprep.subr.mxu0 0.0
        %1642 = vmatpush1.msra.mxu0 0.0
        %1643 = vmatprep.subr.mxu0 0.0
        %1644 = vmatpush1.msra.mxu0 0.0
        %1645 = vmatprep.subr.mxu0 0.0
        %1646 = vmatpush1.msra.mxu0 0.0
        %1647 = vmatprep.subr.mxu0 0.0
        %1648 = vmatpush1.msra.mxu0 0.0
        %1649 = vmatprep.subr.mxu0 0.0
        %1650 = vmatpush1.msra.mxu0 0.0
        %1651 = vmatprep.subr.mxu0 0.0
        %1652 = vmatpush1.msra.mxu0 0.0
        %1653 = vmatprep.subr.mxu0 0.0
        %1654 = vmatpush1.msra.mxu0 0.0
        %1655 = vmatprep.subr.mxu0 0.0
        %1656 = vmatpush1.msra.mxu0 0.0
        %1657 = vmatprep.subr.mxu0 0.0
        %1658 = vmatpush1.msra.mxu0 0.0
        %1659 = vmatprep.subr.mxu0 0.0
        %1660 = vmatpush1.msra.mxu0 0.0
        %1661 = vmatprep.subr.mxu0 0.0
        %1662 = vmatpush1.msra.mxu0 0.0
        %1663 = vmatprep.subr.mxu0 0.0
        %1664 = vmatpush1.msra.mxu0 0.0
        %1665 = vmatprep.subr.mxu0 0.0
        %1666 = vmatpush1.msra.mxu0 0.0
        %1667 = vmatprep.subr.mxu0 0.0
        %1668 = vmatpush1.msra.mxu0 0.0
        %1669 = vmatprep.subr.mxu0 0.0
        %1670 = vmatpush1.msra.mxu0 0.0
        %1671 = vmatprep.subr.mxu0 0.0
        %1672 = vmatpush1.msra.mxu0 0.0
        %1673 = vmatprep.subr.mxu0 0.0
        %1674 = vmatpush1.msra.mxu0 0.0
        %1675 = vmatprep.subr.mxu0 0.0
        %1676 = vmatpush1.msra.mxu0 0.0
        %1677 = vmatprep.subr.mxu0 0.0
        %1678 = vmatpush1.msra.mxu0 0.0
        %1679 = vmatprep.subr.mxu0 0.0
        %1680 = vmatpush1.msra.mxu0 0.0
        %1681 = vmatprep.subr.mxu0 0.0
        %1682 = vmatpush1.msra.mxu0 0.0
        %1683 = vmatprep.subr.mxu0 0.0
        %1684 = vmatpush1.msra.mxu0 0.0
        %1685 = vmatprep.subr.mxu0 0.0
        %1686 = vmatpush1.msra.mxu0 0.0
        %1687 = vmatprep.subr.mxu0 0.0
        %1688 = vmatpush1.msra.mxu0 0.0
        %1689 = vmatprep.mubr.f32.mxu0 0.0
        %1690 = vmatmul.mubr.f32.gmra.mrb[0].mxu0 %v1620
        %v1691 = vpop.f32.mrb[0].mxu0
        %v1692 = vadd.f32 0.0, %v1691
        %v1693 = vpop.f32.mrb[0].mxu0
        %1694 = vmatprep.mubr.f32.mxu0 0.0
        %1695 = vmatmul.mubr.f32.gmra.mrb[0].mxu0 %v1623
        %v1696 = vpop.f32.mrb[0].mxu0
        %v1697 = vadd.f32 0.0, %v1696
        %v1698 = vpop.f32.mrb[0].mxu0
        %1699 = vdwg.mxu0
        %v1701 = vsel %vm359, %v1605, 0
        %v1704 = vsel %vm359, %v1606, 0
        %1706 = vmatprep.subr.mxu0 0.0
        %1707 = vmatpush1.msra.mxu0 %v485
        %1708 = vmatprep.subr.mxu0 0.0
        %1709 = vmatpush1.msra.mxu0 %v490
        %1710 = vmatprep.subr.mxu0 0.0
        %1711 = vmatpush1.msra.mxu0 0.0
        %1712 = vmatprep.subr.mxu0 0.0
        %1713 = vmatpush1.msra.mxu0 0.0
        %1714 = vmatprep.subr.mxu0 0.0
        %1715 = vmatpush1.msra.mxu0 0.0
        %1716 = vmatprep.subr.mxu0 0.0
        %1717 = vmatpush1.msra.mxu0 0.0
        %1718 = vmatprep.subr.mxu0 0.0
        %1719 = vmatpush1.msra.mxu0 0.0
        %1720 = vmatprep.subr.mxu0 0.0
        %1721 = vmatpush1.msra.mxu0 0.0
        %1722 = vmatprep.subr.mxu0 0.0
        %1723 = vmatpush1.msra.mxu0 0.0
        %1724 = vmatprep.subr.mxu0 0.0
        %1725 = vmatpush1.msra.mxu0 0.0
        %1726 = vmatprep.subr.mxu0 0.0
        %1727 = vmatpush1.msra.mxu0 0.0
        %1728 = vmatprep.subr.mxu0 0.0
        %1729 = vmatpush1.msra.mxu0 0.0
        %1730 = vmatprep.subr.mxu0 0.0
        %1731 = vmatpush1.msra.mxu0 0.0
        %1732 = vmatprep.subr.mxu0 0.0
        %1733 = vmatpush1.msra.mxu0 0.0
        %1734 = vmatprep.subr.mxu0 0.0
        %1735 = vmatpush1.msra.mxu0 0.0
        %1736 = vmatprep.subr.mxu0 0.0
        %1737 = vmatpush1.msra.mxu0 0.0
        %1738 = vmatprep.subr.mxu0 0.0
        %1739 = vmatpush1.msra.mxu0 0.0
        %1740 = vmatprep.subr.mxu0 0.0
        %1741 = vmatpush1.msra.mxu0 0.0
        %1742 = vmatprep.subr.mxu0 0.0
        %1743 = vmatpush1.msra.mxu0 0.0
        %1744 = vmatprep.subr.mxu0 0.0
        %1745 = vmatpush1.msra.mxu0 0.0
        %1746 = vmatprep.subr.mxu0 0.0
        %1747 = vmatpush1.msra.mxu0 0.0
        %1748 = vmatprep.subr.mxu0 0.0
        %1749 = vmatpush1.msra.mxu0 0.0
        %1750 = vmatprep.subr.mxu0 0.0
        %1751 = vmatpush1.msra.mxu0 0.0
        %1752 = vmatprep.subr.mxu0 0.0
        %1753 = vmatpush1.msra.mxu0 0.0
        %1754 = vmatprep.subr.mxu0 0.0
        %1755 = vmatpush1.msra.mxu0 0.0
        %1756 = vmatprep.subr.mxu0 0.0
        %1757 = vmatpush1.msra.mxu0 0.0
        %1758 = vmatprep.subr.mxu0 0.0
        %1759 = vmatpush1.msra.mxu0 0.0
        %1760 = vmatprep.subr.mxu0 0.0
        %1761 = vmatpush1.msra.mxu0 0.0
        %1762 = vmatprep.subr.mxu0 0.0
        %1763 = vmatpush1.msra.mxu0 0.0
        %1764 = vmatprep.subr.mxu0 0.0
        %1765 = vmatpush1.msra.mxu0 0.0
        %1766 = vmatprep.subr.mxu0 0.0
        %1767 = vmatpush1.msra.mxu0 0.0
        %1768 = vmatprep.subr.mxu0 0.0
        %1769 = vmatpush1.msra.mxu0 0.0
        %1770 = vmatprep.mubr.f32.mxu0 0.0
        %1771 = vmatmul.mubr.f32.gmra.mrb[0].mxu0 %v1701
        %v1772 = vpop.f32.mrb[0].mxu0
        %v1773 = vadd.f32 0.0, %v1772
        %v1774 = vpop.f32.mrb[0].mxu0
        %1775 = vmatprep.mubr.f32.mxu0 0.0
        %1776 = vmatmul.mubr.f32.gmra.mrb[0].mxu0 %v1704
        %v1777 = vpop.f32.mrb[0].mxu0
        %v1778 = vadd.f32 0.0, %v1777
        %v1779 = vpop.f32.mrb[0].mxu0
        %1780 = vdwg.mxu0
        %v1782 = vsel %vm359, %v1607, 0
        %v1785 = vsel %vm359, %v1608, 0
        %1787 = vmatprep.subr.mxu0 0.0
        %1788 = vmatpush1.msra.mxu0 %v495
        %1789 = vmatprep.subr.mxu0 0.0
        %1790 = vmatpush1.msra.mxu0 %v500
        %1791 = vmatprep.subr.mxu0 0.0
        %1792 = vmatpush1.msra.mxu0 0.0
        %1793 = vmatprep.subr.mxu0 0.0
        %1794 = vmatpush1.msra.mxu0 0.0
        %1795 = vmatprep.subr.mxu0 0.0
        %1796 = vmatpush1.msra.mxu0 0.0
        %1797 = vmatprep.subr.mxu0 0.0
        %1798 = vmatpush1.msra.mxu0 0.0
        %1799 = vmatprep.subr.mxu0 0.0
        %1800 = vmatpush1.msra.mxu0 0.0
        %1801 = vmatprep.subr.mxu0 0.0
        %1802 = vmatpush1.msra.mxu0 0.0
        %1803 = vmatprep.subr.mxu0 0.0
        %1804 = vmatpush1.msra.mxu0 0.0
        %1805 = vmatprep.subr.mxu0 0.0
        %1806 = vmatpush1.msra.mxu0 0.0
        %1807 = vmatprep.subr.mxu0 0.0
        %1808 = vmatpush1.msra.mxu0 0.0
        %1809 = vmatprep.subr.mxu0 0.0
        %1810 = vmatpush1.msra.mxu0 0.0
        %1811 = vmatprep.subr.mxu0 0.0
        %1812 = vmatpush1.msra.mxu0 0.0
        %1813 = vmatprep.subr.mxu0 0.0
        %1814 = vmatpush1.msra.mxu0 0.0
        %1815 = vmatprep.subr.mxu0 0.0
        %1816 = vmatpush1.msra.mxu0 0.0
        %1817 = vmatprep.subr.mxu0 0.0
        %1818 = vmatpush1.msra.mxu0 0.0
        %1819 = vmatprep.subr.mxu0 0.0
        %1820 = vmatpush1.msra.mxu0 0.0
        %1821 = vmatprep.subr.mxu0 0.0
        %1822 = vmatpush1.msra.mxu0 0.0
        %1823 = vmatprep.subr.mxu0 0.0
        %1824 = vmatpush1.msra.mxu0 0.0
        %1825 = vmatprep.subr.mxu0 0.0
        %1826 = vmatpush1.msra.mxu0 0.0
        %1827 = vmatprep.subr.mxu0 0.0
        %1828 = vmatpush1.msra.mxu0 0.0
        %1829 = vmatprep.subr.mxu0 0.0
        %1830 = vmatpush1.msra.mxu0 0.0
        %1831 = vmatprep.subr.mxu0 0.0
        %1832 = vmatpush1.msra.mxu0 0.0
        %1833 = vmatprep.subr.mxu0 0.0
        %1834 = vmatpush1.msra.mxu0 0.0
        %1835 = vmatprep.subr.mxu0 0.0
        %1836 = vmatpush1.msra.mxu0 0.0
        %1837 = vmatprep.subr.mxu0 0.0
        %1838 = vmatpush1.msra.mxu0 0.0
        %1839 = vmatprep.subr.mxu0 0.0
        %1840 = vmatpush1.msra.mxu0 0.0
        %1841 = vmatprep.subr.mxu0 0.0
        %1842 = vmatpush1.msra.mxu0 0.0
        %1843 = vmatprep.subr.mxu0 0.0
        %1844 = vmatpush1.msra.mxu0 0.0
        %1845 = vmatprep.subr.mxu0 0.0
        %1846 = vmatpush1.msra.mxu0 0.0
        %1847 = vmatprep.subr.mxu0 0.0
        %1848 = vmatpush1.msra.mxu0 0.0
        %1849 = vmatprep.subr.mxu0 0.0
        %1850 = vmatpush1.msra.mxu0 0.0
        %1851 = vmatprep.mubr.f32.mxu0 0.0
        %1852 = vmatmul.mubr.f32.gmra.mrb[0].mxu0 %v1782
        %v1853 = vpop.f32.mrb[0].mxu0
        %v1854 = vadd.f32 0.0, %v1853
        %v1855 = vpop.f32.mrb[0].mxu0
        %1856 = vmatprep.mubr.f32.mxu0 0.0
        %1857 = vmatmul.mubr.f32.gmra.mrb[0].mxu0 %v1785
        %v1858 = vpop.f32.mrb[0].mxu0
        %v1859 = vadd.f32 0.0, %v1858
        %v1860 = vpop.f32.mrb[0].mxu0
        %1861 = vdwg.mxu0
        %v1863 = vsel %vm359, %v1609, 0
        %v1866 = vsel %vm359, %v1610, 0
        %1868 = vmatprep.subr.mxu0 0.0
        %1869 = vmatpush1.msra.mxu0 %v505
        %1870 = vmatprep.subr.mxu0 0.0
        %1871 = vmatpush1.msra.mxu0 %v510
        %1872 = vmatprep.subr.mxu0 0.0
        %1873 = vmatpush1.msra.mxu0 0.0
        %1874 = vmatprep.subr.mxu0 0.0
        %1875 = vmatpush1.msra.mxu0 0.0
        %1876 = vmatprep.subr.mxu0 0.0
        %1877 = vmatpush1.msra.mxu0 0.0
        %1878 = vmatprep.subr.mxu0 0.0
        %1879 = vmatpush1.msra.mxu0 0.0
        %1880 = vmatprep.subr.mxu0 0.0
        %1881 = vmatpush1.msra.mxu0 0.0
        %1882 = vmatprep.subr.mxu0 0.0
        %1883 = vmatpush1.msra.mxu0 0.0
        %1884 = vmatprep.subr.mxu0 0.0
        %1885 = vmatpush1.msra.mxu0 0.0
        %1886 = vmatprep.subr.mxu0 0.0
        %1887 = vmatpush1.msra.mxu0 0.0
        %1888 = vmatprep.subr.mxu0 0.0
        %1889 = vmatpush1.msra.mxu0 0.0
        %1890 = vmatprep.subr.mxu0 0.0
        %1891 = vmatpush1.msra.mxu0 0.0
        %1892 = vmatprep.subr.mxu0 0.0
        %1893 = vmatpush1.msra.mxu0 0.0
        %1894 = vmatprep.subr.mxu0 0.0
        %1895 = vmatpush1.msra.mxu0 0.0
        %1896 = vmatprep.subr.mxu0 0.0
        %1897 = vmatpush1.msra.mxu0 0.0
        %1898 = vmatprep.subr.mxu0 0.0
        %1899 = vmatpush1.msra.mxu0 0.0
        %1900 = vmatprep.subr.mxu0 0.0
        %1901 = vmatpush1.msra.mxu0 0.0
        %1902 = vmatprep.subr.mxu0 0.0
        %1903 = vmatpush1.msra.mxu0 0.0
        %1904 = vmatprep.subr.mxu0 0.0
        %1905 = vmatpush1.msra.mxu0 0.0
        %1906 = vmatprep.subr.mxu0 0.0
        %1907 = vmatpush1.msra.mxu0 0.0
        %1908 = vmatprep.subr.mxu0 0.0
        %1909 = vmatpush1.msra.mxu0 0.0
        %1910 = vmatprep.subr.mxu0 0.0
        %1911 = vmatpush1.msra.mxu0 0.0
        %1912 = vmatprep.subr.mxu0 0.0
        %1913 = vmatpush1.msra.mxu0 0.0
        %1914 = vmatprep.subr.mxu0 0.0
        %1915 = vmatpush1.msra.mxu0 0.0
        %1916 = vmatprep.subr.mxu0 0.0
        %1917 = vmatpush1.msra.mxu0 0.0
        %1918 = vmatprep.subr.mxu0 0.0
        %1919 = vmatpush1.msra.mxu0 0.0
        %1920 = vmatprep.subr.mxu0 0.0
        %1921 = vmatpush1.msra.mxu0 0.0
        %1922 = vmatprep.subr.mxu0 0.0
        %1923 = vmatpush1.msra.mxu0 0.0
        %1924 = vmatprep.subr.mxu0 0.0
        %1925 = vmatpush1.msra.mxu0 0.0
        %1926 = vmatprep.subr.mxu0 0.0
        %1927 = vmatpush1.msra.mxu0 0.0
        %1928 = vmatprep.subr.mxu0 0.0
        %1929 = vmatpush1.msra.mxu0 0.0
        %1930 = vmatprep.subr.mxu0 0.0
        %1931 = vmatpush1.msra.mxu0 0.0
        %1932 = vmatprep.mubr.f32.mxu0 0.0
        %1933 = vmatmul.mubr.f32.gmra.mrb[0].mxu0 %v1863
        %v1934 = vpop.f32.mrb[0].mxu0
        %v1935 = vadd.f32 0.0, %v1934
        %v1936 = vpop.f32.mrb[0].mxu0
        %1937 = vmatprep.mubr.f32.mxu0 0.0
        %1938 = vmatmul.mubr.f32.gmra.mrb[0].mxu0 %v1866
        %v1939 = vpop.f32.mrb[0].mxu0
        %v1940 = vadd.f32 0.0, %v1939
        %v1941 = vpop.f32.mrb[0].mxu0
        %1942 = vdwg.mxu0
        %v1944 = vsel %vm359, %v1611, 0
        %v1947 = vsel %vm359, %v1612, 0
        %1949 = vmatprep.subr.mxu0 0.0
        %1950 = vmatpush1.msra.mxu0 %v515
        %1951 = vmatprep.subr.mxu0 0.0
        %1952 = vmatpush1.msra.mxu0 %v520
        %1953 = vmatprep.subr.mxu0 0.0
        %1954 = vmatpush1.msra.mxu0 0.0
        %1955 = vmatprep.subr.mxu0 0.0
        %1956 = vmatpush1.msra.mxu0 0.0
        %1957 = vmatprep.subr.mxu0 0.0
        %1958 = vmatpush1.msra.mxu0 0.0
        %1959 = vmatprep.subr.mxu0 0.0
        %1960 = vmatpush1.msra.mxu0 0.0
        %1961 = vmatprep.subr.mxu0 0.0
        %1962 = vmatpush1.msra.mxu0 0.0
        %1963 = vmatprep.subr.mxu0 0.0
        %1964 = vmatpush1.msra.mxu0 0.0
        %1965 = vmatprep.subr.mxu0 0.0
        %1966 = vmatpush1.msra.mxu0 0.0
        %1967 = vmatprep.subr.mxu0 0.0
        %1968 = vmatpush1.msra.mxu0 0.0
        %1969 = vmatprep.subr.mxu0 0.0
        %1970 = vmatpush1.msra.mxu0 0.0
        %1971 = vmatprep.subr.mxu0 0.0
        %1972 = vmatpush1.msra.mxu0 0.0
        %1973 = vmatprep.subr.mxu0 0.0
        %1974 = vmatpush1.msra.mxu0 0.0
        %1975 = vmatprep.subr.mxu0 0.0
        %1976 = vmatpush1.msra.mxu0 0.0
        %1977 = vmatprep.subr.mxu0 0.0
        %1978 = vmatpush1.msra.mxu0 0.0
        %1979 = vmatprep.subr.mxu0 0.0
        %1980 = vmatpush1.msra.mxu0 0.0
        %1981 = vmatprep.subr.mxu0 0.0
        %1982 = vmatpush1.msra.mxu0 0.0
        %1983 = vmatprep.subr.mxu0 0.0
        %1984 = vmatpush1.msra.mxu0 0.0
        %1985 = vmatprep.subr.mxu0 0.0
        %1986 = vmatpush1.msra.mxu0 0.0
        %1987 = vmatprep.subr.mxu0 0.0
        %1988 = vmatpush1.msra.mxu0 0.0
        %1989 = vmatprep.subr.mxu0 0.0
        %1990 = vmatpush1.msra.mxu0 0.0
        %1991 = vmatprep.subr.mxu0 0.0
        %1992 = vmatpush1.msra.mxu0 0.0
        %1993 = vmatprep.subr.mxu0 0.0
        %1994 = vmatpush1.msra.mxu0 0.0
        %1995 = vmatprep.subr.mxu0 0.0
        %1996 = vmatpush1.msra.mxu0 0.0
        %1997 = vmatprep.subr.mxu0 0.0
        %1998 = vmatpush1.msra.mxu0 0.0
        %1999 = vmatprep.subr.mxu0 0.0
        %2000 = vmatpush1.msra.mxu0 0.0
        %2001 = vmatprep.subr.mxu0 0.0
        %2002 = vmatpush1.msra.mxu0 0.0
        %2003 = vmatprep.subr.mxu0 0.0
        %2004 = vmatpush1.msra.mxu0 0.0
        %2005 = vmatprep.subr.mxu0 0.0
        %2006 = vmatpush1.msra.mxu0 0.0
        %2007 = vmatprep.subr.mxu0 0.0
        %2008 = vmatpush1.msra.mxu0 0.0
        %2009 = vmatprep.subr.mxu0 0.0
        %2010 = vmatpush1.msra.mxu0 0.0
        %2011 = vmatprep.subr.mxu0 0.0
        %2012 = vmatpush1.msra.mxu0 0.0
        %2013 = vmatprep.mubr.f32.mxu0 0.0
        %2014 = vmatmul.mubr.f32.gmra.mrb[0].mxu0 %v1944
        %v2015 = vpop.f32.mrb[0].mxu0
        %v2016 = vadd.f32 0.0, %v2015
        %v2017 = vpop.f32.mrb[0].mxu0
        %2018 = vmatprep.mubr.f32.mxu0 0.0
        %2019 = vmatmul.mubr.f32.gmra.mrb[0].mxu0 %v1947
        %v2020 = vpop.f32.mrb[0].mxu0
        %v2021 = vadd.f32 0.0, %v2020
        %v2022 = vpop.f32.mrb[0].mxu0
        %2023 = vdwg.mxu0
        %v2025 = vsel %vm359, %v1613, 0
        %v2028 = vsel %vm359, %v1614, 0
        %2030 = vmatprep.subr.mxu0 0.0
        %2031 = vmatpush1.msra.mxu0 %v525
        %2032 = vmatprep.subr.mxu0 0.0
        %2033 = vmatpush1.msra.mxu0 %v530
        %2034 = vmatprep.subr.mxu0 0.0
        %2035 = vmatpush1.msra.mxu0 0.0
        %2036 = vmatprep.subr.mxu0 0.0
        %2037 = vmatpush1.msra.mxu0 0.0
        %2038 = vmatprep.subr.mxu0 0.0
        %2039 = vmatpush1.msra.mxu0 0.0
        %2040 = vmatprep.subr.mxu0 0.0
        %2041 = vmatpush1.msra.mxu0 0.0
        %2042 = vmatprep.subr.mxu0 0.0
        %2043 = vmatpush1.msra.mxu0 0.0
        %2044 = vmatprep.subr.mxu0 0.0
        %2045 = vmatpush1.msra.mxu0 0.0
        %2046 = vmatprep.subr.mxu0 0.0
        %2047 = vmatpush1.msra.mxu0 0.0
        %2048 = vmatprep.subr.mxu0 0.0
        %2049 = vmatpush1.msra.mxu0 0.0
        %2050 = vmatprep.subr.mxu0 0.0
        %2051 = vmatpush1.msra.mxu0 0.0
        %2052 = vmatprep.subr.mxu0 0.0
        %2053 = vmatpush1.msra.mxu0 0.0
        %2054 = vmatprep.subr.mxu0 0.0
        %2055 = vmatpush1.msra.mxu0 0.0
        %2056 = vmatprep.subr.mxu0 0.0
        %2057 = vmatpush1.msra.mxu0 0.0
        %2058 = vmatprep.subr.mxu0 0.0
        %2059 = vmatpush1.msra.mxu0 0.0
        %2060 = vmatprep.subr.mxu0 0.0
        %2061 = vmatpush1.msra.mxu0 0.0
        %2062 = vmatprep.subr.mxu0 0.0
        %2063 = vmatpush1.msra.mxu0 0.0
        %2064 = vmatprep.subr.mxu0 0.0
        %2065 = vmatpush1.msra.mxu0 0.0
        %2066 = vmatprep.subr.mxu0 0.0
        %2067 = vmatpush1.msra.mxu0 0.0
        %2068 = vmatprep.subr.mxu0 0.0
        %2069 = vmatpush1.msra.mxu0 0.0
        %2070 = vmatprep.subr.mxu0 0.0
        %2071 = vmatpush1.msra.mxu0 0.0
        %2072 = vmatprep.subr.mxu0 0.0
        %2073 = vmatpush1.msra.mxu0 0.0
        %2074 = vmatprep.subr.mxu0 0.0
        %2075 = vmatpush1.msra.mxu0 0.0
        %2076 = vmatprep.subr.mxu0 0.0
        %2077 = vmatpush1.msra.mxu0 0.0
        %2078 = vmatprep.subr.mxu0 0.0
        %2079 = vmatpush1.msra.mxu0 0.0
        %2080 = vmatprep.subr.mxu0 0.0
        %2081 = vmatpush1.msra.mxu0 0.0
        %2082 = vmatprep.subr.mxu0 0.0
        %2083 = vmatpush1.msra.mxu0 0.0
        %2084 = vmatprep.subr.mxu0 0.0
        %2085 = vmatpush1.msra.mxu0 0.0
        %2086 = vmatprep.subr.mxu0 0.0
        %2087 = vmatpush1.msra.mxu0 0.0
        %2088 = vmatprep.subr.mxu0 0.0
        %2089 = vmatpush1.msra.mxu0 0.0
        %2090 = vmatprep.subr.mxu0 0.0
        %2091 = vmatpush1.msra.mxu0 0.0
        %2092 = vmatprep.subr.mxu0 0.0
        %2093 = vmatpush1.msra.mxu0 0.0
        %2094 = vmatprep.mubr.f32.mxu0 0.0
        %2095 = vmatmul.mubr.f32.gmra.mrb[0].mxu0 %v2025
        %v2096 = vpop.f32.mrb[0].mxu0
        %v2097 = vadd.f32 0.0, %v2096
        %v2098 = vpop.f32.mrb[0].mxu0
        %2099 = vmatprep.mubr.f32.mxu0 0.0
        %2100 = vmatmul.mubr.f32.gmra.mrb[0].mxu0 %v2028
        %v2101 = vpop.f32.mrb[0].mxu0
        %v2102 = vadd.f32 0.0, %v2101
        %v2103 = vpop.f32.mrb[0].mxu0
        %2104 = vdwg.mxu0
        %v2106 = vsel %vm359, %v1615, 0
        %v2109 = vsel %vm359, %v1616, 0
        %2111 = vmatprep.subr.mxu0 0.0
        %2112 = vmatpush1.msra.mxu0 %v535
        %2113 = vmatprep.subr.mxu0 0.0
        %2114 = vmatpush1.msra.mxu0 %v540
        %2115 = vmatprep.subr.mxu0 0.0
        %2116 = vmatpush1.msra.mxu0 0.0
        %2117 = vmatprep.subr.mxu0 0.0
        %2118 = vmatpush1.msra.mxu0 0.0
        %2119 = vmatprep.subr.mxu0 0.0
        %2120 = vmatpush1.msra.mxu0 0.0
        %2121 = vmatprep.subr.mxu0 0.0
        %2122 = vmatpush1.msra.mxu0 0.0
        %2123 = vmatprep.subr.mxu0 0.0
        %2124 = vmatpush1.msra.mxu0 0.0
        %2125 = vmatprep.subr.mxu0 0.0
        %2126 = vmatpush1.msra.mxu0 0.0
        %2127 = vmatprep.subr.mxu0 0.0
        %2128 = vmatpush1.msra.mxu0 0.0
        %2129 = vmatprep.subr.mxu0 0.0
        %2130 = vmatpush1.msra.mxu0 0.0
        %2131 = vmatprep.subr.mxu0 0.0
        %2132 = vmatpush1.msra.mxu0 0.0
        %2133 = vmatprep.subr.mxu0 0.0
        %2134 = vmatpush1.msra.mxu0 0.0
        %2135 = vmatprep.subr.mxu0 0.0
        %2136 = vmatpush1.msra.mxu0 0.0
        %2137 = vmatprep.subr.mxu0 0.0
        %2138 = vmatpush1.msra.mxu0 0.0
        %2139 = vmatprep.subr.mxu0 0.0
        %2140 = vmatpush1.msra.mxu0 0.0
        %2141 = vmatprep.subr.mxu0 0.0
        %2142 = vmatpush1.msra.mxu0 0.0
        %2143 = vmatprep.subr.mxu0 0.0
        %2144 = vmatpush1.msra.mxu0 0.0
        %2145 = vmatprep.subr.mxu0 0.0
        %2146 = vmatpush1.msra.mxu0 0.0
        %2147 = vmatprep.subr.mxu0 0.0
        %2148 = vmatpush1.msra.mxu0 0.0
        %2149 = vmatprep.subr.mxu0 0.0
        %2150 = vmatpush1.msra.mxu0 0.0
        %2151 = vmatprep.subr.mxu0 0.0
        %2152 = vmatpush1.msra.mxu0 0.0
        %2153 = vmatprep.subr.mxu0 0.0
        %2154 = vmatpush1.msra.mxu0 0.0
        %2155 = vmatprep.subr.mxu0 0.0
        %2156 = vmatpush1.msra.mxu0 0.0
        %2157 = vmatprep.subr.mxu0 0.0
        %2158 = vmatpush1.msra.mxu0 0.0
        %2159 = vmatprep.subr.mxu0 0.0
        %2160 = vmatpush1.msra.mxu0 0.0
        %2161 = vmatprep.subr.mxu0 0.0
        %2162 = vmatpush1.msra.mxu0 0.0
        %2163 = vmatprep.subr.mxu0 0.0
        %2164 = vmatpush1.msra.mxu0 0.0
        %2165 = vmatprep.subr.mxu0 0.0
        %2166 = vmatpush1.msra.mxu0 0.0
        %2167 = vmatprep.subr.mxu0 0.0
        %2168 = vmatpush1.msra.mxu0 0.0
        %2169 = vmatprep.subr.mxu0 0.0
        %2170 = vmatpush1.msra.mxu0 0.0
        %2171 = vmatprep.subr.mxu0 0.0
        %2172 = vmatpush1.msra.mxu0 0.0
        %2173 = vmatprep.subr.mxu0 0.0
        %2174 = vmatpush1.msra.mxu0 0.0
        %2175 = vmatprep.mubr.f32.mxu0 0.0
        %2176 = vmatmul.mubr.f32.gmra.mrb[0].mxu0 %v2106
        %v2177 = vpop.f32.mrb[0].mxu0
        %v2178 = vadd.f32 0.0, %v2177
        %v2179 = vpop.f32.mrb[0].mxu0
        %2180 = vmatprep.mubr.f32.mxu0 0.0
        %2181 = vmatmul.mubr.f32.gmra.mrb[0].mxu0 %v2109
        %v2182 = vpop.f32.mrb[0].mxu0
        %v2183 = vadd.f32 0.0, %v2182
        %v2184 = vpop.f32.mrb[0].mxu0
        %2185 = vdwg.mxu0
        %v2187 = vsel %vm359, %v1617, 0
        %v2190 = vsel %vm359, %v1618, 0
        %2192 = vmatprep.subr.mxu0 0.0
        %2193 = vmatpush1.msra.mxu0 %v545
        %2194 = vmatprep.subr.mxu0 0.0
        %2195 = vmatpush1.msra.mxu0 %v550
        %2196 = vmatprep.subr.mxu0 0.0
        %2197 = vmatpush1.msra.mxu0 0.0
        %2198 = vmatprep.subr.mxu0 0.0
        %2199 = vmatpush1.msra.mxu0 0.0
        %2200 = vmatprep.subr.mxu0 0.0
        %2201 = vmatpush1.msra.mxu0 0.0
        %2202 = vmatprep.subr.mxu0 0.0
        %2203 = vmatpush1.msra.mxu0 0.0
        %2204 = vmatprep.subr.mxu0 0.0
        %2205 = vmatpush1.msra.mxu0 0.0
        %2206 = vmatprep.subr.mxu0 0.0
        %2207 = vmatpush1.msra.mxu0 0.0
        %2208 = vmatprep.subr.mxu0 0.0
        %2209 = vmatpush1.msra.mxu0 0.0
        %2210 = vmatprep.subr.mxu0 0.0
        %2211 = vmatpush1.msra.mxu0 0.0
        %2212 = vmatprep.subr.mxu0 0.0
        %2213 = vmatpush1.msra.mxu0 0.0
        %2214 = vmatprep.subr.mxu0 0.0
        %2215 = vmatpush1.msra.mxu0 0.0
        %2216 = vmatprep.subr.mxu0 0.0
        %2217 = vmatpush1.msra.mxu0 0.0
        %2218 = vmatprep.subr.mxu0 0.0
        %2219 = vmatpush1.msra.mxu0 0.0
        %2220 = vmatprep.subr.mxu0 0.0
        %2221 = vmatpush1.msra.mxu0 0.0
        %2222 = vmatprep.subr.mxu0 0.0
        %2223 = vmatpush1.msra.mxu0 0.0
        %2224 = vmatprep.subr.mxu0 0.0
        %2225 = vmatpush1.msra.mxu0 0.0
        %2226 = vmatprep.subr.mxu0 0.0
        %2227 = vmatpush1.msra.mxu0 0.0
        %2228 = vmatprep.subr.mxu0 0.0
        %2229 = vmatpush1.msra.mxu0 0.0
        %2230 = vmatprep.subr.mxu0 0.0
        %2231 = vmatpush1.msra.mxu0 0.0
        %2232 = vmatprep.subr.mxu0 0.0
        %2233 = vmatpush1.msra.mxu0 0.0
        %2234 = vmatprep.subr.mxu0 0.0
        %2235 = vmatpush1.msra.mxu0 0.0
        %2236 = vmatprep.subr.mxu0 0.0
        %2237 = vmatpush1.msra.mxu0 0.0
        %2238 = vmatprep.subr.mxu0 0.0
        %2239 = vmatpush1.msra.mxu0 0.0
        %2240 = vmatprep.subr.mxu0 0.0
        %2241 = vmatpush1.msra.mxu0 0.0
        %2242 = vmatprep.subr.mxu0 0.0
        %2243 = vmatpush1.msra.mxu0 0.0
        %2244 = vmatprep.subr.mxu0 0.0
        %2245 = vmatpush1.msra.mxu0 0.0
        %2246 = vmatprep.subr.mxu0 0.0
        %2247 = vmatpush1.msra.mxu0 0.0
        %2248 = vmatprep.subr.mxu0 0.0
        %2249 = vmatpush1.msra.mxu0 0.0
        %2250 = vmatprep.subr.mxu0 0.0
        %2251 = vmatpush1.msra.mxu0 0.0
        %2252 = vmatprep.subr.mxu0 0.0
        %2253 = vmatpush1.msra.mxu0 0.0
        %2254 = vmatprep.subr.mxu0 0.0
        %2255 = vmatpush1.msra.mxu0 0.0
        %2256 = vmatprep.mubr.f32.mxu0 0.0
        %2257 = vmatmul.mubr.f32.gmra.mrb[0].mxu0 %v2187
        %v2258 = vpop.f32.mrb[0].mxu0
        %v2259 = vadd.f32 0.0, %v2258
        %v2260 = vpop.f32.mrb[0].mxu0
        %2261 = vmatprep.mubr.f32.mxu0 0.0
        %2262 = vmatmul.mubr.f32.gmra.mrb[0].mxu0 %v2190
        %v2263 = vpop.f32.mrb[0].mxu0
        %v2264 = vadd.f32 0.0, %v2263
        %v2265 = vpop.f32.mrb[0].mxu0
        %2266 = vdwg.mxu0
        %vm2267 = vcmask 261120
        %2268 = vst.msk [vmem:[%s326] sm:$0xff] %vm2267, %v1692
        %2269 = vst.msk [vmem:[%s326 + $0x8] sm:$0xff] %vm2267, %v1697
        %2270 = vst.msk [vmem:[%s326 + $0x10] sm:$0xff] %vm2267, %v1773
        %2271 = vst.msk [vmem:[%s326 + $0x18] sm:$0xff] %vm2267, %v1778
        %2272 = vst.msk [vmem:[%s326 + $0x20] sm:$0xff] %vm2267, %v1854
        %2273 = vst.msk [vmem:[%s326 + $0x28] sm:$0xff] %vm2267, %v1859
        %2274 = vst.msk [vmem:[%s326 + $0x30] sm:$0xff] %vm2267, %v1935
        %2275 = vst.msk [vmem:[%s326 + $0x38] sm:$0xff] %vm2267, %v1940
        %2276 = vst.msk [vmem:[%s326 + $0x40] sm:$0xff] %vm2267, %v2016
        %2277 = vst.msk [vmem:[%s326 + $0x48] sm:$0xff] %vm2267, %v2021
        %2278 = vst.msk [vmem:[%s326 + $0x50] sm:$0xff] %vm2267, %v2097
        %2279 = vst.msk [vmem:[%s326 + $0x58] sm:$0xff] %vm2267, %v2102
        %2280 = vst.msk [vmem:[%s326 + $0x60] sm:$0xff] %vm2267, %v2178
        %2281 = vst.msk [vmem:[%s326 + $0x68] sm:$0xff] %vm2267, %v2183
        %2282 = vst.msk [vmem:[%s326 + $0x70] sm:$0xff] %vm2267, %v2259
        %2283 = vst.msk [vmem:[%s326 + $0x78] sm:$0xff] %vm2267, %v2264
        %s2284 = sand.u32 %s225, 1
        %s2285 = scalar_lea.sflag [#allocation3], %s2284
        %s2286 = sand.u32 %s225, 1
        %s2287 = smul.addr %s2286, 128
        %s2288 = scalar_lea.vmem [#allocation2], %s2287
        // Predicated region
        $region57: #{tpu_custom_call.1} parent=55 // pred_check
          %p2289 = pneg %p235
        $region58: #{tpu_custom_call.1} parent=55 // pred_check_branch
          %2291 = sbr.rel (%p2289) target = $region60
        $region59: #{tpu_custom_call.1} parent=55 // pred_region
          %s2292 = smul.u32 8, %s23
          %s2294 = ssub.s32 2048, 2048
          %2295 = vsyncadd %s2285, %s2294
          %s2296 = smul.addr %s2292, 2
          %s2297 = smul.addr %s2296, 128
          %s2298 = scalar_lea.hbm %s9, %s2297
          %s2299 = sshll.u32 %s2288, 4
          %s2300 = int_to_ptr.vmem [resolvable:$true] %s2299
          %2305 = dma.vmem_to_hbm [thread:$0]  %s2300, 2048, %s2298, %s2285, 128, 128, 8
        $region60: #{tpu_custom_call.1} parent=55 // pred_fallthru
          _
      $region56: #{tpu_custom_call.1} parent=5 // pred_fallthru
        _
      %p2306 = scmp.le.s32.totalorder 2, %s18
      // Predicated region
      $region61: #{tpu_custom_call.1} parent=5 // pred_check
        %p2307 = pneg %p2306
      $region62: #{tpu_custom_call.1} parent=5 // pred_check_branch
        %2309 = sbr.rel (%p2307) target = $region64
      $region63: #{tpu_custom_call.1} parent=5 // pred_region
        %s2310 = ssub.s32 %s18, 2
        // Predicated region
        $region65: #{tpu_custom_call.1} parent=63 // pred_check
          %p2311 = pneg %p241
        $region66: #{tpu_custom_call.1} parent=63 // pred_check_branch
          %2313 = sbr.rel (%p2311) target = $region68
        $region67: #{tpu_custom_call.1} parent=63 // pred_region
          %s2314 = sand.u32 %s226, 1
          %s2315 = scalar_lea.sflag [#allocation3], %s2314
          %s2316 = sand.u32 %s226, 1
          %s2317 = smul.addr %s2316, 128
          %s2318 = scalar_lea.vmem [#allocation2], %s2317
          %2319 = dma.done %s2315, 2048
        $region68: #{tpu_custom_call.1} parent=63 // pred_fallthru
          _
      $region64: #{tpu_custom_call.1} parent=5 // pred_fallthru
        _
    $region6: #{tpu_custom_call.1} parent=1 // loop_footer
      %s22 = sadd.s32 1, %s18
    $region7: #{tpu_custom_call.1} parent=1 // loop_footer_branch
      %17 = sbr.rel target = $region3
    $region8: #{tpu_custom_call.1} parent=1 // loop_exit
      _
    %2320 = vsyncpa [#allocation3], 1
    %s2321 = scalar_lea.sflag [#allocation3], 1
    %2322 = vsyncpa %s2321, 1

</llo_original>
